<compile_context>
chip_gen: v7x
topology: tpu7x:2x2x1
jax: 0.10.0
libtpu: 0.0.40
codegen_flags: <defaults>
</compile_context>

<pallas_src>
import jax
import jax.numpy as jnp
from jax.experimental import pallas as pl
from jax.experimental.pallas import tpu as pltpu


# ----------------------------- Pallas kernel --------------------------------
def _lstm_kernel(x_ref, zx_ref, zh_ref, h0_ref, c0_ref,
                 wxblk_ref, whblk_ref, b_ref,
                 hn_ref, hT_ref, cT_ref):
    B, H = h0_ref.shape
    TB, D = x_ref.shape
    T = TB // B
    G = 4
    mm_dtype = whblk_ref.dtype          # hidden-side matmul operand dtype

    # ---- hoisted input projection: one MXU call for ALL T steps (f32, off the
    # serial path).  x is replicated across the 4 gate lane-groups and masked
    # by the per-gate input dropout masks; the block-diagonal wx then yields
    # all 4 gate pre-activations at once.  Folded bias (bx+bh) added once.
    x = x_ref[...]                                           # (T*B, D)
    x4 = jnp.concatenate([x, x, x, x], axis=-1)              # (T*B, 4D) lane copy
    zx = zx_ref[...]                                         # (B, 4D)
    zx_tb = jnp.tile(zx, (T, 1))                             # (T*B, 4D) sublane tile
    xg = x4 * zx_tb                                          # f32 operands
    xproj = jnp.dot(xg, wxblk_ref[...],
                    preferred_element_type=jnp.float32)      # (T*B, 4H)
    xproj = xproj + b_ref[...]                               # bx+bh folded once

    zh = zh_ref[...]            # (B, 4H) loop-invariant hidden masks
    whb = whblk_ref[...]        # (4H, 4H) block-diagonal hidden weights (bf16/f32)

    h = h0_ref[...]             # (B, H) carried as values (no scratch)
    c = c0_ref[...]
    h4 = jnp.concatenate([h, h, h, h], axis=-1)              # (B, 4H) exact copy

    # ---- serial recurrence: statically unrolled (T small & static here).
    # For large T use lax.fori_loop(unroll=...) + pl.ds stores instead.
    for t in range(T):
        hg = (h4 * zh).astype(mm_dtype)                      # masked hidden (B,4H)
        pre = xproj[t * B:(t + 1) * B, :] + jnp.dot(
            hg, whb, preferred_element_type=jnp.float32)     # (B,4H)=(8,128)

        sig = jax.nn.sigmoid(pre)                            # 1 EUP launch, full vreg
        g_g = jnp.tanh(pre[:, 2 * H:3 * H])                  # tanh on c lane-group
        c = sig[:, 1 * H:2 * H] * c + sig[:, 0 * H:1 * H] * g_g
        h = sig[:, 3 * H:4 * H] * jnp.tanh(c)

        h4 = jnp.concatenate([h, h, h, h], axis=-1)          # needed next step anyway
        hn_ref[t * B:(t + 1) * B, :] = h4                    # unmasked (8,128) store

    # Final state written exactly once (one-time small masked store is fine).
    hT_ref[...] = h
    cT_ref[...] = c


def lstm_forward_pallas(x, h0, c0, zx, zh, wx, bx, wh, bh,
                        *, hidden_matmul_dtype=jnp.bfloat16):
    """Variational-dropout LSTM over the full sequence (single pallas_call).

    x:  (T, B, D) f32;  h0, c0: (B, H);  zx: (4, B, D);  zh: (4, B, H)
    wx: (4, D, H);  bx: (4, H);  wh: (4, H, H);  bh: (4, H)
    Returns hn (T, B, H), (h_T, c_T).
    """
    T, B, D = x.shape
    H = h0.shape[-1]
    G = 4

    # ------------- layout plumbing in plain JAX (free glue) -----------------
    x_flat = x.reshape(T * B, D).astype(jnp.float32)              # no replication
    zx_cat = jnp.transpose(zx, (1, 0, 2)).reshape(B, G * D)       # (B, 4D)
    zh_cat = jnp.transpose(zh, (1, 0, 2)).reshape(B, G * H)       # (B, 4H)

    # block-diagonal weights -> one lane-dense MXU call per side
    wx_blk = jnp.zeros((G * D, G * H), jnp.float32)
    wh_blk = jnp.zeros((G * H, G * H), jnp.float32)
    for g in range(G):
        wx_blk = wx_blk.at[g * D:(g + 1) * D, g * H:(g + 1) * H].set(wx[g])
        wh_blk = wh_blk.at[g * H:(g + 1) * H, g * H:(g + 1) * H].set(wh[g])
    # input projection stays f32 (runs once); hidden side defaults to bf16
    wh_blk = wh_blk.astype(hidden_matmul_dtype)

    b_cat = (bx + bh).reshape(1, G * H).astype(jnp.float32)       # folded biases

    full = lambda a: pl.BlockSpec(a.shape, lambda i: (0,) * a.ndim)

    out_shapes = (
        jax.ShapeDtypeStruct((T * B, G * H), jnp.float32),        # hn, lane-dense slab
        jax.ShapeDtypeStruct((B, H), jnp.float32),                # h_T
        jax.ShapeDtypeStruct((B, H), jnp.float32),                # c_T
    )

    hn_wide, h_T, c_T = pl.pallas_call(
        _lstm_kernel,
        out_shape=out_shapes,
        grid_spec=pltpu.PrefetchScalarGridSpec(
            num_scalar_prefetch=0,
            grid=(1,),
            in_specs=[full(x_flat), full(zx_cat), full(zh_cat),
                      full(h0), full(c0),
                      full(wx_blk), full(wh_blk), full(b_cat)],
            out_specs=[pl.BlockSpec((T * B, G * H), lambda i: (0, 0)),
                       pl.BlockSpec((B, H), lambda i: (0, 0)),
                       pl.BlockSpec((B, H), lambda i: (0, 0))],
        ),
        compiler_params=pltpu.CompilerParams(
            dimension_semantics=("arbitrary",)),
    )(x_flat, zx_cat, zh_cat, h0, c0, wx_blk, wh_blk, b_cat)

    # hn slab holds [h h h h] per row; take the first lane-group (layout plumbing).
    hn = hn_wide[:, :H].reshape(T, B, H)
    return hn, (h_T, c_T)


# ------------------------------- glue (JAX) ----------------------------------
# TODO(synk): regularizer() is a training-time L2/dropout penalty over the
# parameters; it has no kernel equivalent and is left to plain JAX.
def sample_mask(key, p, B, input_size, hidden_size):
    """Replicates DropoutUncertaintyLSTMCell._sample_mask (concrete-dropout relax)."""
    GATES = 4
    eps = 1e-07
    t = 0.1
    kx, kh = jax.random.split(key)
    ux = jax.random.uniform(kx, (GATES, B, input_size), dtype=jnp.float32)
    uh = jax.random.uniform(kh, (GATES, B, hidden_size), dtype=jnp.float32)
    logit_p = jnp.log(p + eps) - jnp.log(1.0 - p + eps)
    if input_size == 1:
        zx = 1.0 - jax.nn.sigmoid(
            (jnp.log(eps) - jnp.log(1.0 + eps)
             + jnp.log(ux + eps) - jnp.log(1.0 - ux + eps)) / t)
    else:
        zx = (1.0 - jax.nn.sigmoid(
            (logit_p + jnp.log(ux + eps) - jnp.log(1.0 - ux + eps)) / t)) / (1.0 - p)
    zh = (1.0 - jax.nn.sigmoid(
        (logit_p + jnp.log(uh + eps) - jnp.log(1.0 - uh + eps)) / t)) / (1.0 - p)
    return zx, zh


def init_params(key, input_size, hidden_size):
    """uniform(-k, k) init like the module, k = 1/sqrt(hidden_size).

    Returns stacked, pre-transposed weights: wx (4, D, H), bx (4, H),
    wh (4, H, H), bh (4, H); gate order (i, f, c, o)."""
    k = 1.0 / jnp.sqrt(jnp.float32(hidden_size))
    keys = jax.random.split(key, 16)
    u = lambda kk, shape: jax.random.uniform(kk, shape, jnp.float32, -k, k)
    wx = jnp.stack([u(keys[i], (input_size, hidden_size)) for i in range(4)])
    bx = jnp.stack([u(keys[4 + i], (hidden_size,)) for i in range(4)])
    wh = jnp.stack([u(keys[8 + i], (hidden_size, hidden_size)) for i in range(4)])
    bh = jnp.stack([u(keys[12 + i], (hidden_size,)) for i in range(4)])
    return wx, bx, wh, bh


def lstm_forward_ref(x, h0, c0, zx, zh, wx, bx, wh, bh):
    """Pure-JAX reference matching the PyTorch forward loop."""
    def step(carry, x_t):
        h, c = carry
        pre = []
        for g in range(4):
            pre.append((x_t * zx[g]) @ wx[g] + bx[g]
                       + (h * zh[g]) @ wh[g] + bh[g])
        i = jax.nn.sigmoid(pre[0])
        f = jax.nn.sigmoid(pre[1])
        c_tilde = jnp.tanh(pre[2])
        o = jax.nn.sigmoid(pre[3])
        c_new = f * c + i * c_tilde
        h_new = o * jnp.tanh(c_new)
        return (h_new, c_new), h_new

    (h_T, c_T), hn = jax.lax.scan(step, (h0, c0), x)
    return hn, (h_T, c_T)


if __name__ == "__main__":
    T, B = 8, 8
    input_size, hidden_size = 16, 32
    dropout = 0.25

    root = jax.random.PRNGKey(0)
    k_x, k_mask, k_w = jax.random.split(root, 3)

    x = jax.random.normal(k_x, (T, B, input_size), dtype=jnp.float32)
    h0 = jnp.zeros((B, hidden_size), dtype=jnp.float32)
    c0 = jnp.zeros((B, hidden_size), dtype=jnp.float32)

    zx, zh = sample_mask(k_mask, dropout, B, input_size, hidden_size)
    wx, bx, wh, bh = init_params(k_w, input_size, hidden_size)

    hn_ref, (h_ref, c_ref) = lstm_forward_ref(x, h0, c0, zx, zh, wx, bx, wh, bh)

    # Default path: bf16 hidden-side MXU operands (native single-pass on
    # v5e/v6e/v7x); gate/state elementwise math and accumulation stay f32.
    hn, (h_T, c_T) = lstm_forward_pallas(x, h0, c0, zx, zh, wx, bx, wh, bh)
    jax.block_until_ready((hn, h_T, c_T))
    assert jnp.allclose(hn, hn_ref, atol=5e-2, rtol=5e-2)
    assert jnp.allclose(h_T, h_ref, atol=5e-2, rtol=5e-2)
    assert jnp.allclose(c_T, c_ref, atol=5e-2, rtol=5e-2)

    # Full-f32 MXU-operand path: now exact lane replication (no rep_eye matmul),
    # so it matches the reference tightly.
    hn32, (h32, c32) = lstm_forward_pallas(
        x, h0, c0, zx, zh, wx, bx, wh, bh, hidden_matmul_dtype=jnp.float32)
    jax.block_until_ready((hn32, h32, c32))
    assert jnp.allclose(hn32, hn_ref, atol=1e-3, rtol=1e-3)
    assert jnp.allclose(h32, h_ref, atol=1e-3, rtol=1e-3)
    assert jnp.allclose(c32, c_ref, atol=1e-3, rtol=1e-3)

    print("KERNEL_OK")
</pallas_src>

<mosaic_0001>
module attributes {stable_mosaic.version = 11 : i64} {
  func.func @_lstm_kernel(%arg0: i32, %arg1: memref<64x16xf32, #tpu.memory_space<vmem>>, %arg2: memref<8x64xf32, #tpu.memory_space<vmem>>, %arg3: memref<8x128xf32, #tpu.memory_space<vmem>>, %arg4: memref<8x32xf32, #tpu.memory_space<vmem>>, %arg5: memref<8x32xf32, #tpu.memory_space<vmem>>, %arg6: memref<64x128xf32, #tpu.memory_space<vmem>>, %arg7: memref<128x128xbf16, #tpu.memory_space<vmem>>, %arg8: memref<1x128xf32, #tpu.memory_space<vmem>>, %arg9: memref<64x128xf32, #tpu.memory_space<vmem>>, %arg10: memref<8x32xf32, #tpu.memory_space<vmem>>, %arg11: memref<8x32xf32, #tpu.memory_space<vmem>>) attributes {dimension_semantics = [#tpu.dimension_semantics<arbitrary>], iteration_bounds = array<i64: 1>, scalar_prefetch = 0 : i64, scratch_operands = 0 : i64, tpu.core_type = #tpu.core_type<tc>, window_params = [{pipeline_mode = #tpu.pipeline_mode<synchronous>, transform_indices = @transform_0, window_bounds = array<i64: 64, 16>}, {pipeline_mode = #tpu.pipeline_mode<synchronous>, transform_indices = @transform_1, window_bounds = array<i64: 8, 64>}, {pipeline_mode = #tpu.pipeline_mode<synchronous>, transform_indices = @transform_2, window_bounds = array<i64: 8, 128>}, {pipeline_mode = #tpu.pipeline_mode<synchronous>, transform_indices = @transform_3, window_bounds = array<i64: 8, 32>}, {pipeline_mode = #tpu.pipeline_mode<synchronous>, transform_indices = @transform_4, window_bounds = array<i64: 8, 32>}, {pipeline_mode = #tpu.pipeline_mode<synchronous>, transform_indices = @transform_5, window_bounds = array<i64: 64, 128>}, {pipeline_mode = #tpu.pipeline_mode<synchronous>, transform_indices = @transform_6, window_bounds = array<i64: 128, 128>}, {pipeline_mode = #tpu.pipeline_mode<synchronous>, transform_indices = @transform_7, window_bounds = array<i64: 1, 128>}, {pipeline_mode = #tpu.pipeline_mode<synchronous>, transform_indices = @transform_8, window_bounds = array<i64: 64, 128>}, {pipeline_mode = #tpu.pipeline_mode<synchronous>, transform_indices = @transform_9, window_bounds = array<i64: 8, 32>}, {pipeline_mode = #tpu.pipeline_mode<synchronous>, transform_indices = @transform_10, window_bounds = array<i64: 8, 32>}]} {
    %c0 = arith.constant 0 : index
    %c0_0 = arith.constant 0 : index
    %0 = vector.load %arg1[%c0, %c0_0] : memref<64x16xf32, #tpu.memory_space<vmem>>, vector<64x16xf32>
    %1 = tpu.concatenate %0, %0, %0, %0 in 1 : vector<64x16xf32>, vector<64x16xf32>, vector<64x16xf32>, vector<64x16xf32> -> vector<64x64xf32>
    %c0_1 = arith.constant 0 : index
    %c0_2 = arith.constant 0 : index
    %2 = vector.load %arg2[%c0_1, %c0_2] : memref<8x64xf32, #tpu.memory_space<vmem>>, vector<8x64xf32>
    %3 = tpu.concatenate %2, %2, %2, %2, %2, %2, %2, %2 in 0 : vector<8x64xf32>, vector<8x64xf32>, vector<8x64xf32>, vector<8x64xf32>, vector<8x64xf32>, vector<8x64xf32>, vector<8x64xf32>, vector<8x64xf32> -> vector<64x64xf32>
    %4 = arith.mulf %1, %3 : vector<64x64xf32>
    %c0_3 = arith.constant 0 : index
    %c0_4 = arith.constant 0 : index
    %5 = vector.load %arg6[%c0_3, %c0_4] : memref<64x128xf32, #tpu.memory_space<vmem>>, vector<64x128xf32>
    %cst = arith.constant dense<0.000000e+00> : vector<64x128xf32>
    %6 = tpu.matmul %4, %5, %cst {dimension_numbers = #tpu.dot_dimension_numbers<[1], [0], [0], [1], [0, 0, 1, 1], [], []>} : vector<64x64xf32>, vector<64x128xf32>, vector<64x128xf32> -> vector<64x128xf32>
    %c0_5 = arith.constant 0 : index
    %c0_6 = arith.constant 0 : index
    %7 = vector.load %arg8[%c0_5, %c0_6] : memref<1x128xf32, #tpu.memory_space<vmem>>, vector<1x128xf32>
    %8 = vector.broadcast %7 : vector<1x128xf32> to vector<64x128xf32>
    %9 = arith.addf %6, %8 : vector<64x128xf32>
    %c0_7 = arith.constant 0 : index
    %c0_8 = arith.constant 0 : index
    %10 = vector.load %arg3[%c0_7, %c0_8] : memref<8x128xf32, #tpu.memory_space<vmem>>, vector<8x128xf32>
    %c0_9 = arith.constant 0 : index
    %c0_10 = arith.constant 0 : index
    %11 = vector.load %arg7[%c0_9, %c0_10] : memref<128x128xbf16, #tpu.memory_space<vmem>>, vector<128x128xbf16>
    %c0_11 = arith.constant 0 : index
    %c0_12 = arith.constant 0 : index
    %12 = vector.load %arg4[%c0_11, %c0_12] : memref<8x32xf32, #tpu.memory_space<vmem>>, vector<8x32xf32>
    %c0_13 = arith.constant 0 : index
    %c0_14 = arith.constant 0 : index
    %13 = vector.load %arg5[%c0_13, %c0_14] : memref<8x32xf32, #tpu.memory_space<vmem>>, vector<8x32xf32>
    %14 = tpu.concatenate %12, %12, %12, %12 in 1 : vector<8x32xf32>, vector<8x32xf32>, vector<8x32xf32>, vector<8x32xf32> -> vector<8x128xf32>
    %15 = arith.mulf %14, %10 : vector<8x128xf32>
    %16 = arith.truncf %15 : vector<8x128xf32> to vector<8x128xbf16>
    %17 = vector.extract_strided_slice %9 {offsets = [0, 0], sizes = [8, 128], strides = [1, 1]} : vector<64x128xf32> to vector<8x128xf32>
    %cst_15 = arith.constant dense<0.000000e+00> : vector<8x128xf32>
    %18 = tpu.matmul %16, %11, %cst_15 {dimension_numbers = #tpu.dot_dimension_numbers<[1], [0], [0], [1], [0, 0, 1, 1], [], []>} : vector<8x128xbf16>, vector<128x128xbf16>, vector<8x128xf32> -> vector<8x128xf32>
    %19 = arith.addf %17, %18 : vector<8x128xf32>
    %20 = arith.negf %19 : vector<8x128xf32>
    %21 = math.exp %20 : vector<8x128xf32>
    %cst_16 = arith.constant 1.000000e+00 : f32
    %22 = vector.broadcast %cst_16 : f32 to vector<8x128xf32>
    %23 = arith.addf %22, %21 : vector<8x128xf32>
    %24 = arith.divf %22, %23 : vector<8x128xf32>
    %25 = vector.extract_strided_slice %19 {offsets = [0, 64], sizes = [8, 32], strides = [1, 1]} : vector<8x128xf32> to vector<8x32xf32>
    %26 = math.tanh %25 : vector<8x32xf32>
    %27 = vector.extract_strided_slice %24 {offsets = [0, 32], sizes = [8, 32], strides = [1, 1]} : vector<8x128xf32> to vector<8x32xf32>
    %28 = arith.mulf %27, %13 : vector<8x32xf32>
    %29 = vector.extract_strided_slice %24 {offsets = [0, 0], sizes = [8, 32], strides = [1, 1]} : vector<8x128xf32> to vector<8x32xf32>
    %30 = arith.mulf %29, %26 : vector<8x32xf32>
    %31 = arith.addf %28, %30 : vector<8x32xf32>
    %32 = vector.extract_strided_slice %24 {offsets = [0, 96], sizes = [8, 32], strides = [1, 1]} : vector<8x128xf32> to vector<8x32xf32>
    %33 = math.tanh %31 : vector<8x32xf32>
    %34 = arith.mulf %32, %33 : vector<8x32xf32>
    %35 = tpu.concatenate %34, %34, %34, %34 in 1 : vector<8x32xf32>, vector<8x32xf32>, vector<8x32xf32>, vector<8x32xf32> -> vector<8x128xf32>
    %c0_17 = arith.constant 0 : index
    %c0_18 = arith.constant 0 : index
    %36 = vector.load %arg9[%c0_17, %c0_18] : memref<64x128xf32, #tpu.memory_space<vmem>>, vector<8x128xf32>
    tpu.vector_store %arg9[%c0_17, %c0_18], %35 {strides = array<i32>} : memref<64x128xf32, #tpu.memory_space<vmem>>, vector<8x128xf32>,
    %37 = arith.mulf %35, %10 : vector<8x128xf32>
    %38 = arith.truncf %37 : vector<8x128xf32> to vector<8x128xbf16>
    %39 = vector.extract_strided_slice %9 {offsets = [8, 0], sizes = [8, 128], strides = [1, 1]} : vector<64x128xf32> to vector<8x128xf32>
    %cst_19 = arith.constant dense<0.000000e+00> : vector<8x128xf32>
    %40 = tpu.matmul %38, %11, %cst_19 {dimension_numbers = #tpu.dot_dimension_numbers<[1], [0], [0], [1], [0, 0, 1, 1], [], []>} : vector<8x128xbf16>, vector<128x128xbf16>, vector<8x128xf32> -> vector<8x128xf32>
    %41 = arith.addf %39, %40 : vector<8x128xf32>
    %42 = arith.negf %41 : vector<8x128xf32>
    %43 = math.exp %42 : vector<8x128xf32>
    %cst_20 = arith.constant 1.000000e+00 : f32
    %44 = vector.broadcast %cst_20 : f32 to vector<8x128xf32>
    %45 = arith.addf %44, %43 : vector<8x128xf32>
    %46 = arith.divf %44, %45 : vector<8x128xf32>
    %47 = vector.extract_strided_slice %41 {offsets = [0, 64], sizes = [8, 32], strides = [1, 1]} : vector<8x128xf32> to vector<8x32xf32>
    %48 = math.tanh %47 : vector<8x32xf32>
    %49 = vector.extract_strided_slice %46 {offsets = [0, 32], sizes = [8, 32], strides = [1, 1]} : vector<8x128xf32> to vector<8x32xf32>
    %50 = arith.mulf %49, %31 : vector<8x32xf32>
    %51 = vector.extract_strided_slice %46 {offsets = [0, 0], sizes = [8, 32], strides = [1, 1]} : vector<8x128xf32> to vector<8x32xf32>
    %52 = arith.mulf %51, %48 : vector<8x32xf32>
    %53 = arith.addf %50, %52 : vector<8x32xf32>
    %54 = vector.extract_strided_slice %46 {offsets = [0, 96], sizes = [8, 32], strides = [1, 1]} : vector<8x128xf32> to vector<8x32xf32>
    %55 = math.tanh %53 : vector<8x32xf32>
    %56 = arith.mulf %54, %55 : vector<8x32xf32>
    %57 = tpu.concatenate %56, %56, %56, %56 in 1 : vector<8x32xf32>, vector<8x32xf32>, vector<8x32xf32>, vector<8x32xf32> -> vector<8x128xf32>
    %c8 = arith.constant 8 : index
    %c0_21 = arith.constant 0 : index
    %58 = vector.load %arg9[%c8, %c0_21] : memref<64x128xf32, #tpu.memory_space<vmem>>, vector<8x128xf32>
    tpu.vector_store %arg9[%c8, %c0_21], %57 {strides = array<i32>} : memref<64x128xf32, #tpu.memory_space<vmem>>, vector<8x128xf32>,
    %59 = arith.mulf %57, %10 : vector<8x128xf32>
    %60 = arith.truncf %59 : vector<8x128xf32> to vector<8x128xbf16>
    %61 = vector.extract_strided_slice %9 {offsets = [16, 0], sizes = [8, 128], strides = [1, 1]} : vector<64x128xf32> to vector<8x128xf32>
    %cst_22 = arith.constant dense<0.000000e+00> : vector<8x128xf32>
    %62 = tpu.matmul %60, %11, %cst_22 {dimension_numbers = #tpu.dot_dimension_numbers<[1], [0], [0], [1], [0, 0, 1, 1], [], []>} : vector<8x128xbf16>, vector<128x128xbf16>, vector<8x128xf32> -> vector<8x128xf32>
    %63 = arith.addf %61, %62 : vector<8x128xf32>
    %64 = arith.negf %63 : vector<8x128xf32>
    %65 = math.exp %64 : vector<8x128xf32>
    %cst_23 = arith.constant 1.000000e+00 : f32
    %66 = vector.broadcast %cst_23 : f32 to vector<8x128xf32>
    %67 = arith.addf %66, %65 : vector<8x128xf32>
    %68 = arith.divf %66, %67 : vector<8x128xf32>
    %69 = vector.extract_strided_slice %63 {offsets = [0, 64], sizes = [8, 32], strides = [1, 1]} : vector<8x128xf32> to vector<8x32xf32>
    %70 = math.tanh %69 : vector<8x32xf32>
    %71 = vector.extract_strided_slice %68 {offsets = [0, 32], sizes = [8, 32], strides = [1, 1]} : vector<8x128xf32> to vector<8x32xf32>
    %72 = arith.mulf %71, %53 : vector<8x32xf32>
    %73 = vector.extract_strided_slice %68 {offsets = [0, 0], sizes = [8, 32], strides = [1, 1]} : vector<8x128xf32> to vector<8x32xf32>
    %74 = arith.mulf %73, %70 : vector<8x32xf32>
    %75 = arith.addf %72, %74 : vector<8x32xf32>
    %76 = vector.extract_strided_slice %68 {offsets = [0, 96], sizes = [8, 32], strides = [1, 1]} : vector<8x128xf32> to vector<8x32xf32>
    %77 = math.tanh %75 : vector<8x32xf32>
    %78 = arith.mulf %76, %77 : vector<8x32xf32>
    %79 = tpu.concatenate %78, %78, %78, %78 in 1 : vector<8x32xf32>, vector<8x32xf32>, vector<8x32xf32>, vector<8x32xf32> -> vector<8x128xf32>
    %c16 = arith.constant 16 : index
    %c0_24 = arith.constant 0 : index
    %80 = vector.load %arg9[%c16, %c0_24] : memref<64x128xf32, #tpu.memory_space<vmem>>, vector<8x128xf32>
    tpu.vector_store %arg9[%c16, %c0_24], %79 {strides = array<i32>} : memref<64x128xf32, #tpu.memory_space<vmem>>, vector<8x128xf32>,
    %81 = arith.mulf %79, %10 : vector<8x128xf32>
    %82 = arith.truncf %81 : vector<8x128xf32> to vector<8x128xbf16>
    %83 = vector.extract_strided_slice %9 {offsets = [24, 0], sizes = [8, 128], strides = [1, 1]} : vector<64x128xf32> to vector<8x128xf32>
    %cst_25 = arith.constant dense<0.000000e+00> : vector<8x128xf32>
    %84 = tpu.matmul %82, %11, %cst_25 {dimension_numbers = #tpu.dot_dimension_numbers<[1], [0], [0], [1], [0, 0, 1, 1], [], []>} : vector<8x128xbf16>, vector<128x128xbf16>, vector<8x128xf32> -> vector<8x128xf32>
    %85 = arith.addf %83, %84 : vector<8x128xf32>
    %86 = arith.negf %85 : vector<8x128xf32>
    %87 = math.exp %86 : vector<8x128xf32>
    %cst_26 = arith.constant 1.000000e+00 : f32
    %88 = vector.broadcast %cst_26 : f32 to vector<8x128xf32>
    %89 = arith.addf %88, %87 : vector<8x128xf32>
    %90 = arith.divf %88, %89 : vector<8x128xf32>
    %91 = vector.extract_strided_slice %85 {offsets = [0, 64], sizes = [8, 32], strides = [1, 1]} : vector<8x128xf32> to vector<8x32xf32>
    %92 = math.tanh %91 : vector<8x32xf32>
    %93 = vector.extract_strided_slice %90 {offsets = [0, 32], sizes = [8, 32], strides = [1, 1]} : vector<8x128xf32> to vector<8x32xf32>
    %94 = arith.mulf %93, %75 : vector<8x32xf32>
    %95 = vector.extract_strided_slice %90 {offsets = [0, 0], sizes = [8, 32], strides = [1, 1]} : vector<8x128xf32> to vector<8x32xf32>
    %96 = arith.mulf %95, %92 : vector<8x32xf32>
    %97 = arith.addf %94, %96 : vector<8x32xf32>
    %98 = vector.extract_strided_slice %90 {offsets = [0, 96], sizes = [8, 32], strides = [1, 1]} : vector<8x128xf32> to vector<8x32xf32>
    %99 = math.tanh %97 : vector<8x32xf32>
    %100 = arith.mulf %98, %99 : vector<8x32xf32>
    %101 = tpu.concatenate %100, %100, %100, %100 in 1 : vector<8x32xf32>, vector<8x32xf32>, vector<8x32xf32>, vector<8x32xf32> -> vector<8x128xf32>
    %c24 = arith.constant 24 : index
    %c0_27 = arith.constant 0 : index
    %102 = vector.load %arg9[%c24, %c0_27] : memref<64x128xf32, #tpu.memory_space<vmem>>, vector<8x128xf32>
    tpu.vector_store %arg9[%c24, %c0_27], %101 {strides = array<i32>} : memref<64x128xf32, #tpu.memory_space<vmem>>, vector<8x128xf32>,
    %103 = arith.mulf %101, %10 : vector<8x128xf32>
    %104 = arith.truncf %103 : vector<8x128xf32> to vector<8x128xbf16>
    %105 = vector.extract_strided_slice %9 {offsets = [32, 0], sizes = [8, 128], strides = [1, 1]} : vector<64x128xf32> to vector<8x128xf32>
    %cst_28 = arith.constant dense<0.000000e+00> : vector<8x128xf32>
    %106 = tpu.matmul %104, %11, %cst_28 {dimension_numbers = #tpu.dot_dimension_numbers<[1], [0], [0], [1], [0, 0, 1, 1], [], []>} : vector<8x128xbf16>, vector<128x128xbf16>, vector<8x128xf32> -> vector<8x128xf32>
    %107 = arith.addf %105, %106 : vector<8x128xf32>
    %108 = arith.negf %107 : vector<8x128xf32>
    %109 = math.exp %108 : vector<8x128xf32>
    %cst_29 = arith.constant 1.000000e+00 : f32
    %110 = vector.broadcast %cst_29 : f32 to vector<8x128xf32>
    %111 = arith.addf %110, %109 : vector<8x128xf32>
    %112 = arith.divf %110, %111 : vector<8x128xf32>
    %113 = vector.extract_strided_slice %107 {offsets = [0, 64], sizes = [8, 32], strides = [1, 1]} : vector<8x128xf32> to vector<8x32xf32>
    %114 = math.tanh %113 : vector<8x32xf32>
    %115 = vector.extract_strided_slice %112 {offsets = [0, 32], sizes = [8, 32], strides = [1, 1]} : vector<8x128xf32> to vector<8x32xf32>
    %116 = arith.mulf %115, %97 : vector<8x32xf32>
    %117 = vector.extract_strided_slice %112 {offsets = [0, 0], sizes = [8, 32], strides = [1, 1]} : vector<8x128xf32> to vector<8x32xf32>
    %118 = arith.mulf %117, %114 : vector<8x32xf32>
    %119 = arith.addf %116, %118 : vector<8x32xf32>
    %120 = vector.extract_strided_slice %112 {offsets = [0, 96], sizes = [8, 32], strides = [1, 1]} : vector<8x128xf32> to vector<8x32xf32>
    %121 = math.tanh %119 : vector<8x32xf32>
    %122 = arith.mulf %120, %121 : vector<8x32xf32>
    %123 = tpu.concatenate %122, %122, %122, %122 in 1 : vector<8x32xf32>, vector<8x32xf32>, vector<8x32xf32>, vector<8x32xf32> -> vector<8x128xf32>
    %c32 = arith.constant 32 : index
    %c0_30 = arith.constant 0 : index
    %124 = vector.load %arg9[%c32, %c0_30] : memref<64x128xf32, #tpu.memory_space<vmem>>, vector<8x128xf32>
    tpu.vector_store %arg9[%c32, %c0_30], %123 {strides = array<i32>} : memref<64x128xf32, #tpu.memory_space<vmem>>, vector<8x128xf32>,
    %125 = arith.mulf %123, %10 : vector<8x128xf32>
    %126 = arith.truncf %125 : vector<8x128xf32> to vector<8x128xbf16>
    %127 = vector.extract_strided_slice %9 {offsets = [40, 0], sizes = [8, 128], strides = [1, 1]} : vector<64x128xf32> to vector<8x128xf32>
    %cst_31 = arith.constant dense<0.000000e+00> : vector<8x128xf32>
    %128 = tpu.matmul %126, %11, %cst_31 {dimension_numbers = #tpu.dot_dimension_numbers<[1], [0], [0], [1], [0, 0, 1, 1], [], []>} : vector<8x128xbf16>, vector<128x128xbf16>, vector<8x128xf32> -> vector<8x128xf32>
    %129 = arith.addf %127, %128 : vector<8x128xf32>
    %130 = arith.negf %129 : vector<8x128xf32>
    %131 = math.exp %130 : vector<8x128xf32>
    %cst_32 = arith.constant 1.000000e+00 : f32
    %132 = vector.broadcast %cst_32 : f32 to vector<8x128xf32>
    %133 = arith.addf %132, %131 : vector<8x128xf32>
    %134 = arith.divf %132, %133 : vector<8x128xf32>
    %135 = vector.extract_strided_slice %129 {offsets = [0, 64], sizes = [8, 32], strides = [1, 1]} : vector<8x128xf32> to vector<8x32xf32>
    %136 = math.tanh %135 : vector<8x32xf32>
    %137 = vector.extract_strided_slice %134 {offsets = [0, 32], sizes = [8, 32], strides = [1, 1]} : vector<8x128xf32> to vector<8x32xf32>
    %138 = arith.mulf %137, %119 : vector<8x32xf32>
    %139 = vector.extract_strided_slice %134 {offsets = [0, 0], sizes = [8, 32], strides = [1, 1]} : vector<8x128xf32> to vector<8x32xf32>
    %140 = arith.mulf %139, %136 : vector<8x32xf32>
    %141 = arith.addf %138, %140 : vector<8x32xf32>
    %142 = vector.extract_strided_slice %134 {offsets = [0, 96], sizes = [8, 32], strides = [1, 1]} : vector<8x128xf32> to vector<8x32xf32>
    %143 = math.tanh %141 : vector<8x32xf32>
    %144 = arith.mulf %142, %143 : vector<8x32xf32>
    %145 = tpu.concatenate %144, %144, %144, %144 in 1 : vector<8x32xf32>, vector<8x32xf32>, vector<8x32xf32>, vector<8x32xf32> -> vector<8x128xf32>
    %c40 = arith.constant 40 : index
    %c0_33 = arith.constant 0 : index
    %146 = vector.load %arg9[%c40, %c0_33] : memref<64x128xf32, #tpu.memory_space<vmem>>, vector<8x128xf32>
    tpu.vector_store %arg9[%c40, %c0_33], %145 {strides = array<i32>} : memref<64x128xf32, #tpu.memory_space<vmem>>, vector<8x128xf32>,
    %147 = arith.mulf %145, %10 : vector<8x128xf32>
    %148 = arith.truncf %147 : vector<8x128xf32> to vector<8x128xbf16>
    %149 = vector.extract_strided_slice %9 {offsets = [48, 0], sizes = [8, 128], strides = [1, 1]} : vector<64x128xf32> to vector<8x128xf32>
    %cst_34 = arith.constant dense<0.000000e+00> : vector<8x128xf32>
    %150 = tpu.matmul %148, %11, %cst_34 {dimension_numbers = #tpu.dot_dimension_numbers<[1], [0], [0], [1], [0, 0, 1, 1], [], []>} : vector<8x128xbf16>, vector<128x128xbf16>, vector<8x128xf32> -> vector<8x128xf32>
    %151 = arith.addf %149, %150 : vector<8x128xf32>
    %152 = arith.negf %151 : vector<8x128xf32>
    %153 = math.exp %152 : vector<8x128xf32>
    %cst_35 = arith.constant 1.000000e+00 : f32
    %154 = vector.broadcast %cst_35 : f32 to vector<8x128xf32>
    %155 = arith.addf %154, %153 : vector<8x128xf32>
    %156 = arith.divf %154, %155 : vector<8x128xf32>
    %157 = vector.extract_strided_slice %151 {offsets = [0, 64], sizes = [8, 32], strides = [1, 1]} : vector<8x128xf32> to vector<8x32xf32>
    %158 = math.tanh %157 : vector<8x32xf32>
    %159 = vector.extract_strided_slice %156 {offsets = [0, 32], sizes = [8, 32], strides = [1, 1]} : vector<8x128xf32> to vector<8x32xf32>
    %160 = arith.mulf %159, %141 : vector<8x32xf32>
    %161 = vector.extract_strided_slice %156 {offsets = [0, 0], sizes = [8, 32], strides = [1, 1]} : vector<8x128xf32> to vector<8x32xf32>
    %162 = arith.mulf %161, %158 : vector<8x32xf32>
    %163 = arith.addf %160, %162 : vector<8x32xf32>
    %164 = vector.extract_strided_slice %156 {offsets = [0, 96], sizes = [8, 32], strides = [1, 1]} : vector<8x128xf32> to vector<8x32xf32>
    %165 = math.tanh %163 : vector<8x32xf32>
    %166 = arith.mulf %164, %165 : vector<8x32xf32>
    %167 = tpu.concatenate %166, %166, %166, %166 in 1 : vector<8x32xf32>, vector<8x32xf32>, vector<8x32xf32>, vector<8x32xf32> -> vector<8x128xf32>
    %c48 = arith.constant 48 : index
    %c0_36 = arith.constant 0 : index
    %168 = vector.load %arg9[%c48, %c0_36] : memref<64x128xf32, #tpu.memory_space<vmem>>, vector<8x128xf32>
    tpu.vector_store %arg9[%c48, %c0_36], %167 {strides = array<i32>} : memref<64x128xf32, #tpu.memory_space<vmem>>, vector<8x128xf32>,
    %169 = arith.mulf %167, %10 : vector<8x128xf32>
    %170 = arith.truncf %169 : vector<8x128xf32> to vector<8x128xbf16>
    %171 = vector.extract_strided_slice %9 {offsets = [56, 0], sizes = [8, 128], strides = [1, 1]} : vector<64x128xf32> to vector<8x128xf32>
    %cst_37 = arith.constant dense<0.000000e+00> : vector<8x128xf32>
    %172 = tpu.matmul %170, %11, %cst_37 {dimension_numbers = #tpu.dot_dimension_numbers<[1], [0], [0], [1], [0, 0, 1, 1], [], []>} : vector<8x128xbf16>, vector<128x128xbf16>, vector<8x128xf32> -> vector<8x128xf32>
    %173 = arith.addf %171, %172 : vector<8x128xf32>
    %174 = arith.negf %173 : vector<8x128xf32>
    %175 = math.exp %174 : vector<8x128xf32>
    %cst_38 = arith.constant 1.000000e+00 : f32
    %176 = vector.broadcast %cst_38 : f32 to vector<8x128xf32>
    %177 = arith.addf %176, %175 : vector<8x128xf32>
    %178 = arith.divf %176, %177 : vector<8x128xf32>
    %179 = vector.extract_strided_slice %173 {offsets = [0, 64], sizes = [8, 32], strides = [1, 1]} : vector<8x128xf32> to vector<8x32xf32>
    %180 = math.tanh %179 : vector<8x32xf32>
    %181 = vector.extract_strided_slice %178 {offsets = [0, 32], sizes = [8, 32], strides = [1, 1]} : vector<8x128xf32> to vector<8x32xf32>
    %182 = arith.mulf %181, %163 : vector<8x32xf32>
    %183 = vector.extract_strided_slice %178 {offsets = [0, 0], sizes = [8, 32], strides = [1, 1]} : vector<8x128xf32> to vector<8x32xf32>
    %184 = arith.mulf %183, %180 : vector<8x32xf32>
    %185 = arith.addf %182, %184 : vector<8x32xf32>
    %186 = vector.extract_strided_slice %178 {offsets = [0, 96], sizes = [8, 32], strides = [1, 1]} : vector<8x128xf32> to vector<8x32xf32>
    %187 = math.tanh %185 : vector<8x32xf32>
    %188 = arith.mulf %186, %187 : vector<8x32xf32>
    %189 = tpu.concatenate %188, %188, %188, %188 in 1 : vector<8x32xf32>, vector<8x32xf32>, vector<8x32xf32>, vector<8x32xf32> -> vector<8x128xf32>
    %c56 = arith.constant 56 : index
    %c0_39 = arith.constant 0 : index
    %190 = vector.load %arg9[%c56, %c0_39] : memref<64x128xf32, #tpu.memory_space<vmem>>, vector<8x128xf32>
    tpu.vector_store %arg9[%c56, %c0_39], %189 {strides = array<i32>} : memref<64x128xf32, #tpu.memory_space<vmem>>, vector<8x128xf32>,
    %c0_40 = arith.constant 0 : index
    %c0_41 = arith.constant 0 : index
    %191 = vector.load %arg10[%c0_40, %c0_41] : memref<8x32xf32, #tpu.memory_space<vmem>>, vector<8x32xf32>
    tpu.vector_store %arg10[%c0_40, %c0_41], %188 {strides = array<i32>} : memref<8x32xf32, #tpu.memory_space<vmem>>, vector<8x32xf32>,
    %c0_42 = arith.constant 0 : index
    %c0_43 = arith.constant 0 : index
    %192 = vector.load %arg11[%c0_42, %c0_43] : memref<8x32xf32, #tpu.memory_space<vmem>>, vector<8x32xf32>
    tpu.vector_store %arg11[%c0_42, %c0_43], %185 {strides = array<i32>} : memref<8x32xf32, #tpu.memory_space<vmem>>, vector<8x32xf32>,
    return
  }
  func.func @transform_0(%arg0: i32) -> (i32, i32) {
    %c0_i32 = arith.constant 0 : i32
    %c0_i32_0 = arith.constant 0 : i32
    %c0_i32_1 = arith.constant 0 : i32
    return %c0_i32, %c0_i32_0 : i32, i32
  }
  func.func @transform_1(%arg0: i32) -> (i32, i32) {
    %c0_i32 = arith.constant 0 : i32
    %c0_i32_0 = arith.constant 0 : i32
    %c0_i32_1 = arith.constant 0 : i32
    return %c0_i32, %c0_i32_0 : i32, i32
  }
  func.func @transform_2(%arg0: i32) -> (i32, i32) {
    %c0_i32 = arith.constant 0 : i32
    %c0_i32_0 = arith.constant 0 : i32
    %c0_i32_1 = arith.constant 0 : i32
    return %c0_i32, %c0_i32_0 : i32, i32
  }
  func.func @transform_3(%arg0: i32) -> (i32, i32) {
    %c0_i32 = arith.constant 0 : i32
    %c0_i32_0 = arith.constant 0 : i32
    %c0_i32_1 = arith.constant 0 : i32
    return %c0_i32, %c0_i32_0 : i32, i32
  }
  func.func @transform_4(%arg0: i32) -> (i32, i32) {
    %c0_i32 = arith.constant 0 : i32
    %c0_i32_0 = arith.constant 0 : i32
    %c0_i32_1 = arith.constant 0 : i32
    return %c0_i32, %c0_i32_0 : i32, i32
  }
  func.func @transform_5(%arg0: i32) -> (i32, i32) {
    %c0_i32 = arith.constant 0 : i32
    %c0_i32_0 = arith.constant 0 : i32
    %c0_i32_1 = arith.constant 0 : i32
    return %c0_i32, %c0_i32_0 : i32, i32
  }
  func.func @transform_6(%arg0: i32) -> (i32, i32) {
    %c0_i32 = arith.constant 0 : i32
    %c0_i32_0 = arith.constant 0 : i32
    %c0_i32_1 = arith.constant 0 : i32
    return %c0_i32, %c0_i32_0 : i32, i32
  }
  func.func @transform_7(%arg0: i32) -> (i32, i32) {
    %c0_i32 = arith.constant 0 : i32
    %c0_i32_0 = arith.constant 0 : i32
    %c0_i32_1 = arith.constant 0 : i32
    return %c0_i32, %c0_i32_0 : i32, i32
  }
  func.func @transform_8(%arg0: i32) -> (i32, i32) {
    %c0_i32 = arith.constant 0 : i32
    %c0_i32_0 = arith.constant 0 : i32
    %c0_i32_1 = arith.constant 0 : i32
    return %c0_i32, %c0_i32_0 : i32, i32
  }
  func.func @transform_9(%arg0: i32) -> (i32, i32) {
    %c0_i32 = arith.constant 0 : i32
    %c0_i32_0 = arith.constant 0 : i32
    %c0_i32_1 = arith.constant 0 : i32
    return %c0_i32, %c0_i32_0 : i32, i32
  }
  func.func @transform_10(%arg0: i32) -> (i32, i32) {
    %c0_i32 = arith.constant 0 : i32
    %c0_i32_0 = arith.constant 0 : i32
    %c0_i32_1 = arith.constant 0 : i32
    return %c0_i32, %c0_i32_0 : i32, i32
  }
}

</mosaic_0001>

<llo_original>
// kernel: tpu_custom_call.1
$region0: #{tpu_custom_call.1}
  #allocation0 [shape = 'u32[]', space=smem, size = 0x4, offset = 0x4, fixed_abs, tag = 'smem constant byte address 0x4 - core index']
  #allocation1 [shape = 'u32[144,128]{1,0:T(1,128)}', space=vmem, size = 0x12000, scoped, tag = 'internal scratch']
  %s0 = inlined_call_operand.vmem [shape: f32[64,16], index: 0, kind: input, shape index: {}]
  %s1 = inlined_call_operand.vmem [shape: f32[8,64], index: 1, kind: input, shape index: {}]
  %s2 = inlined_call_operand.vmem [shape: f32[8,128], index: 2, kind: input, shape index: {}]
  %s3 = inlined_call_operand.vmem [shape: f32[8,32], index: 3, kind: input, shape index: {}]
  %s4 = inlined_call_operand.vmem [shape: f32[8,32], index: 4, kind: input, shape index: {}]
  %s5 = inlined_call_operand.vmem [shape: f32[64,128], index: 5, kind: input, shape index: {}]
  %s6 = inlined_call_operand.hbm [shape: bf16[128,128], index: 6, kind: input, shape index: {}]
  %s7 = inlined_call_operand.vmem [shape: f32[1,128], index: 7, kind: input, shape index: {}]
  %s8 = inlined_call_operand.hbm [shape: f32[64,128], index: 8, kind: output, shape index: {0}]
  %s9 = inlined_call_operand.hbm [shape: f32[8,32], index: 9, kind: output, shape index: {1}]
  %s10 = inlined_call_operand.hbm [shape: f32[8,32], index: 10, kind: output, shape index: {2}]
  %11 = xla_tuple %s8, %s9, %s10
  %s12 = sld [smem:[#allocation0]]
  $region62: #{tpu_custom_call.1} parent=0
    _
  %s14 = ssub.s32 1, %s12
  %s15 = scalar_select 0, %s14, %s12
  $region1: #{tpu_custom_call.1} parent=0
    #allocation2 [shape = 'u8[32768]{0}', space=vmem, size = 0x8000, scoped, tag = 'input window, operand 6, single buffered']
    #allocation3 [shape = 's32[1]{0}', space=sflag, size = 0x4, scoped, tag = 'scoped memory for tpu_custom_call.1']
    #allocation4 [shape = 's32[1]{0}', space=sflag, size = 0x4, scoped, tag = 'scoped memory for tpu_custom_call.1']
    #allocation5 [shape = 'u8[32768]{0}', space=vmem, size = 0x8000, scoped, tag = 'output window, operand 0, single buffered']
    #allocation6 [shape = 'u8[4096]{0}', space=vmem, size = 0x1000, scoped, tag = 'output window, operand 1, single buffered']
    #allocation7 [shape = 's32[1]{0}', space=sflag, size = 0x4, scoped, tag = 'scoped memory for tpu_custom_call.1']
    #allocation8 [shape = 'u8[4096]{0}', space=vmem, size = 0x1000, scoped, tag = 'output window, operand 2, single buffered']
    %16 = vsyncpa [#allocation3], 0
    %17 = vsyncpa [#allocation4], 0
    %18 = vsyncpa [#allocation7], 0
    // Predicated region
    $region2: #{tpu_custom_call.1} parent=1 // pred_check
      _
    $region3: #{tpu_custom_call.1} parent=1 // pred_check_branch
      %20 = sbr.rel (0) target = $region5
    $region4: #{tpu_custom_call.1} parent=1 // pred_region
      _
    $region5: #{tpu_custom_call.1} parent=1 // pred_fallthru
      _
    // Predicated region
    $region6: #{tpu_custom_call.1} parent=1 // pred_check
      _
    $region7: #{tpu_custom_call.1} parent=1 // pred_check_branch
      %22 = sbr.rel (0) target = $region9
    $region8: #{tpu_custom_call.1} parent=1 // pred_region
      _
    $region9: #{tpu_custom_call.1} parent=1 // pred_fallthru
      _
    // Predicated region
    $region10: #{tpu_custom_call.1} parent=1 // pred_check
      _
    $region11: #{tpu_custom_call.1} parent=1 // pred_check_branch
      %24 = sbr.rel (0) target = $region13
    $region12: #{tpu_custom_call.1} parent=1 // pred_region
      _
    $region13: #{tpu_custom_call.1} parent=1 // pred_fallthru
      _
    // Predicated region
    $region14: #{tpu_custom_call.1} parent=1 // pred_check
      _
    $region15: #{tpu_custom_call.1} parent=1 // pred_check_branch
      %26 = sbr.rel (0) target = $region17
    $region16: #{tpu_custom_call.1} parent=1 // pred_region
      _
    $region17: #{tpu_custom_call.1} parent=1 // pred_fallthru
      _
    // Predicated region
    $region18: #{tpu_custom_call.1} parent=1 // pred_check
      _
    $region19: #{tpu_custom_call.1} parent=1 // pred_check_branch
      %28 = sbr.rel (0) target = $region21
    $region20: #{tpu_custom_call.1} parent=1 // pred_region
      _
    $region21: #{tpu_custom_call.1} parent=1 // pred_fallthru
      _
    // Predicated region
    $region22: #{tpu_custom_call.1} parent=1 // pred_check
      _
    $region23: #{tpu_custom_call.1} parent=1 // pred_check_branch
      %30 = sbr.rel (0) target = $region25
    $region24: #{tpu_custom_call.1} parent=1 // pred_region
      _
    $region25: #{tpu_custom_call.1} parent=1 // pred_fallthru
      _
    // Predicated region
    $region26: #{tpu_custom_call.1} parent=1 // pred_check
      _
    $region27: #{tpu_custom_call.1} parent=1 // pred_check_branch
      %32 = sbr.rel (0) target = $region29
    $region28: #{tpu_custom_call.1} parent=1 // pred_region
      %s34 = ssub.s32 1024, 1024
      %35 = vsyncadd [#allocation3], %s34
      %s36 = sshll.u32 [#allocation2], 4
      %s37 = int_to_ptr.vmem [resolvable:$true] %s36
      %42 = dma.hbm_to_vmem [thread:$0]  %s6, 1024, %s37, [#allocation3], 64, 64, 4
    $region29: #{tpu_custom_call.1} parent=1 // pred_fallthru
      _
    // Predicated region
    $region30: #{tpu_custom_call.1} parent=1 // pred_check
      _
    $region31: #{tpu_custom_call.1} parent=1 // pred_check_branch
      %44 = sbr.rel (0) target = $region33
    $region32: #{tpu_custom_call.1} parent=1 // pred_region
      _
    $region33: #{tpu_custom_call.1} parent=1 // pred_fallthru
      _
    // Predicated region
    $region34: #{tpu_custom_call.1} parent=1 // pred_check
      _
    $region35: #{tpu_custom_call.1} parent=1 // pred_check_branch
      %46 = sbr.rel (0) target = $region37
    $region36: #{tpu_custom_call.1} parent=1 // pred_region
      %47 = dma.done [#allocation3], 1024
    $region37: #{tpu_custom_call.1} parent=1 // pred_fallthru
      _
    %v49 = vld [vmem:[%s0] sm:$0xff]
    %v50 = vld [vmem:[%s0 + $0x8] sm:$0xff]
    %v51 = vld [vmem:[%s0 + $0x10] sm:$0xff]
    %v52 = vld [vmem:[%s0 + $0x18] sm:$0xff]
    %v53 = vld [vmem:[%s0 + $0x20] sm:$0xff]
    %v54 = vld [vmem:[%s0 + $0x28] sm:$0xff]
    %v55 = vld [vmem:[%s0 + $0x30] sm:$0xff]
    %v56 = vld [vmem:[%s0 + $0x38] sm:$0xff]
    %65 = vrot.lane.b32.xlu0 %v49, 16
    %v66 = vpop.permute.xlu0 %65
    %67 = vrot.lane.b32.xlu0 %v50, 16
    %v68 = vpop.permute.xlu0 %67
    %69 = vrot.lane.b32.xlu0 %v51, 16
    %v70 = vpop.permute.xlu0 %69
    %71 = vrot.lane.b32.xlu0 %v52, 16
    %v72 = vpop.permute.xlu0 %71
    %73 = vrot.lane.b32.xlu0 %v53, 16
    %v74 = vpop.permute.xlu0 %73
    %75 = vrot.lane.b32.xlu0 %v54, 16
    %v76 = vpop.permute.xlu0 %75
    %77 = vrot.lane.b32.xlu0 %v55, 16
    %v78 = vpop.permute.xlu0 %77
    %79 = vrot.lane.b32.xlu0 %v56, 16
    %v80 = vpop.permute.xlu0 %79
    %89 = vrot.lane.b32.xlu0 %v49, 32
    %v90 = vpop.permute.xlu0 %89
    %91 = vrot.lane.b32.xlu0 %v50, 32
    %v92 = vpop.permute.xlu0 %91
    %93 = vrot.lane.b32.xlu0 %v51, 32
    %v94 = vpop.permute.xlu0 %93
    %95 = vrot.lane.b32.xlu0 %v52, 32
    %v96 = vpop.permute.xlu0 %95
    %97 = vrot.lane.b32.xlu0 %v53, 32
    %v98 = vpop.permute.xlu0 %97
    %99 = vrot.lane.b32.xlu0 %v54, 32
    %v100 = vpop.permute.xlu0 %99
    %101 = vrot.lane.b32.xlu0 %v55, 32
    %v102 = vpop.permute.xlu0 %101
    %103 = vrot.lane.b32.xlu0 %v56, 32
    %v104 = vpop.permute.xlu0 %103
    %113 = vrot.lane.b32.xlu0 %v49, 48
    %v114 = vpop.permute.xlu0 %113
    %115 = vrot.lane.b32.xlu0 %v50, 48
    %v116 = vpop.permute.xlu0 %115
    %117 = vrot.lane.b32.xlu0 %v51, 48
    %v118 = vpop.permute.xlu0 %117
    %119 = vrot.lane.b32.xlu0 %v52, 48
    %v120 = vpop.permute.xlu0 %119
    %121 = vrot.lane.b32.xlu0 %v53, 48
    %v122 = vpop.permute.xlu0 %121
    %123 = vrot.lane.b32.xlu0 %v54, 48
    %v124 = vpop.permute.xlu0 %123
    %125 = vrot.lane.b32.xlu0 %v55, 48
    %v126 = vpop.permute.xlu0 %125
    %127 = vrot.lane.b32.xlu0 %v56, 48
    %v128 = vpop.permute.xlu0 %127
    %vm137 = vcmask 130048
    %v138 = vsel %vm137, %v49, %v66
    %v139 = vsel %vm137, %v50, %v68
    %v140 = vsel %vm137, %v51, %v70
    %v141 = vsel %vm137, %v52, %v72
    %v142 = vsel %vm137, %v53, %v74
    %v143 = vsel %vm137, %v54, %v76
    %v144 = vsel %vm137, %v55, %v78
    %v145 = vsel %vm137, %v56, %v80
    %vm146 = vcmask 261120
    %v147 = vsel %vm146, %v138, %v90
    %v148 = vsel %vm146, %v139, %v92
    %v149 = vsel %vm146, %v140, %v94
    %v150 = vsel %vm146, %v141, %v96
    %v151 = vsel %vm146, %v142, %v98
    %v152 = vsel %vm146, %v143, %v100
    %v153 = vsel %vm146, %v144, %v102
    %v154 = vsel %vm146, %v145, %v104
    %vm155 = vcmask 392192
    %v156 = vsel %vm155, %v147, %v114
    %v157 = vsel %vm155, %v148, %v116
    %v158 = vsel %vm155, %v149, %v118
    %v159 = vsel %vm155, %v150, %v120
    %v160 = vsel %vm155, %v151, %v122
    %v161 = vsel %vm155, %v152, %v124
    %v162 = vsel %vm155, %v153, %v126
    %v163 = vsel %vm155, %v154, %v128
    %v164 = vld [vmem:[%s1] sm:$0xff]
    %v165 = vmul.f32 %v156, %v164
    %v166 = vmul.f32 %v157, %v164
    %v167 = vmul.f32 %v158, %v164
    %v168 = vmul.f32 %v159, %v164
    %v169 = vmul.f32 %v160, %v164
    %v170 = vmul.f32 %v161, %v164
    %v171 = vmul.f32 %v162, %v164
    %v172 = vmul.f32 %v163, %v164
    %v173 = vld [vmem:[%s5] sm:$0xff]
    %v174 = vld [vmem:[%s5 + $0x8] sm:$0xff]
    %v175 = vld [vmem:[%s5 + $0x10] sm:$0xff]
    %v176 = vld [vmem:[%s5 + $0x18] sm:$0xff]
    %v177 = vld [vmem:[%s5 + $0x20] sm:$0xff]
    %v178 = vld [vmem:[%s5 + $0x28] sm:$0xff]
    %v179 = vld [vmem:[%s5 + $0x30] sm:$0xff]
    %v180 = vld [vmem:[%s5 + $0x38] sm:$0xff]
    %v181 = vld [vmem:[%s7] sm:$0x1]
    %v183 = vlaneseq
    %v184 = vshrl.u32 %v183, 7
    %v185 = vsub.s32 0, %v184
    %v186 = vrot.slane %v181, %v185
    %vm188 = vcmask 523264
    %v190 = vsel %vm188, %v165, 0
    %v193 = vsel %vm188, %v166, 0
    %v196 = vsel %vm188, %v167, 0
    %v199 = vsel %vm188, %v168, 0
    %v202 = vsel %vm188, %v169, 0
    %v205 = vsel %vm188, %v170, 0
    %v208 = vsel %vm188, %v171, 0
    %v211 = vsel %vm188, %v172, 0
    %213 = vmatprep.subr.mxu0 0.0
    %214 = vmatpush1.msra.mxu0 %v173
    %215 = vmatprep.subr.mxu0 0.0
    %216 = vmatpush1.msra.mxu0 %v174
    %217 = vmatprep.subr.mxu0 0.0
    %218 = vmatpush1.msra.mxu0 %v175
    %219 = vmatprep.subr.mxu0 0.0
    %220 = vmatpush1.msra.mxu0 %v176
    %221 = vmatprep.subr.mxu0 0.0
    %222 = vmatpush1.msra.mxu0 %v177
    %223 = vmatprep.subr.mxu0 0.0
    %224 = vmatpush1.msra.mxu0 %v178
    %225 = vmatprep.subr.mxu0 0.0
    %226 = vmatpush1.msra.mxu0 %v179
    %227 = vmatprep.subr.mxu0 0.0
    %228 = vmatpush1.msra.mxu0 %v180
    %229 = vmatprep.subr.mxu0 0.0
    %230 = vmatpush1.msra.mxu0 0.0
    %231 = vmatprep.subr.mxu0 0.0
    %232 = vmatpush1.msra.mxu0 0.0
    %233 = vmatprep.subr.mxu0 0.0
    %234 = vmatpush1.msra.mxu0 0.0
    %235 = vmatprep.subr.mxu0 0.0
    %236 = vmatpush1.msra.mxu0 0.0
    %237 = vmatprep.subr.mxu0 0.0
    %238 = vmatpush1.msra.mxu0 0.0
    %239 = vmatprep.subr.mxu0 0.0
    %240 = vmatpush1.msra.mxu0 0.0
    %241 = vmatprep.subr.mxu0 0.0
    %242 = vmatpush1.msra.mxu0 0.0
    %243 = vmatprep.subr.mxu0 0.0
    %244 = vmatpush1.msra.mxu0 0.0
    %245 = vmatprep.subr.mxu0 0.0
    %246 = vmatpush1.msra.mxu0 0.0
    %247 = vmatprep.subr.mxu0 0.0
    %248 = vmatpush1.msra.mxu0 0.0
    %249 = vmatprep.subr.mxu0 0.0
    %250 = vmatpush1.msra.mxu0 0.0
    %251 = vmatprep.subr.mxu0 0.0
    %252 = vmatpush1.msra.mxu0 0.0
    %253 = vmatprep.subr.mxu0 0.0
    %254 = vmatpush1.msra.mxu0 0.0
    %255 = vmatprep.subr.mxu0 0.0
    %256 = vmatpush1.msra.mxu0 0.0
    %257 = vmatprep.subr.mxu0 0.0
    %258 = vmatpush1.msra.mxu0 0.0
    %259 = vmatprep.subr.mxu0 0.0
    %260 = vmatpush1.msra.mxu0 0.0
    %261 = vmatprep.subr.mxu0 0.0
    %262 = vmatpush1.msra.mxu0 0.0
    %263 = vmatprep.subr.mxu0 0.0
    %264 = vmatpush1.msra.mxu0 0.0
    %265 = vmatprep.subr.mxu0 0.0
    %266 = vmatpush1.msra.mxu0 0.0
    %267 = vmatprep.subr.mxu0 0.0
    %268 = vmatpush1.msra.mxu0 0.0
    %269 = vmatprep.subr.mxu0 0.0
    %270 = vmatpush1.msra.mxu0 0.0
    %271 = vmatprep.subr.mxu0 0.0
    %272 = vmatpush1.msra.mxu0 0.0
    %273 = vmatprep.subr.mxu0 0.0
    %274 = vmatpush1.msra.mxu0 0.0
    %275 = vmatprep.subr.mxu0 0.0
    %276 = vmatpush1.msra.mxu0 0.0
    %277 = vmatprep.mubr.f32.mxu0 0.0
    %278 = vmatmul.mubr.f32.gmra.mrb[0].mxu0 %v190
    %v279 = vpop.f32.mrb[0].mxu0
    %v280 = vadd.f32 %v186, %v279
    %v281 = vpop.f32.mrb[0].mxu0
    %282 = vmatprep.mubr.f32.mxu0 0.0
    %283 = vmatmul.mubr.f32.gmra.mrb[0].mxu0 %v193
    %v284 = vpop.f32.mrb[0].mxu0
    %v285 = vadd.f32 %v186, %v284
    %v286 = vpop.f32.mrb[0].mxu0
    %287 = vmatprep.mubr.f32.mxu0 0.0
    %288 = vmatmul.mubr.f32.gmra.mrb[0].mxu0 %v196
    %v289 = vpop.f32.mrb[0].mxu0
    %v290 = vadd.f32 %v186, %v289
    %v291 = vpop.f32.mrb[0].mxu0
    %292 = vmatprep.mubr.f32.mxu0 0.0
    %293 = vmatmul.mubr.f32.gmra.mrb[0].mxu0 %v199
    %v294 = vpop.f32.mrb[0].mxu0
    %v295 = vadd.f32 %v186, %v294
    %v296 = vpop.f32.mrb[0].mxu0
    %297 = vmatprep.mubr.f32.mxu0 0.0
    %298 = vmatmul.mubr.f32.gmra.mrb[0].mxu0 %v202
    %v299 = vpop.f32.mrb[0].mxu0
    %v300 = vadd.f32 %v186, %v299
    %v301 = vpop.f32.mrb[0].mxu0
    %302 = vmatprep.mubr.f32.mxu0 0.0
    %303 = vmatmul.mubr.f32.gmra.mrb[0].mxu0 %v205
    %v304 = vpop.f32.mrb[0].mxu0
    %v305 = vadd.f32 %v186, %v304
    %v306 = vpop.f32.mrb[0].mxu0
    %307 = vmatprep.mubr.f32.mxu0 0.0
    %308 = vmatmul.mubr.f32.gmra.mrb[0].mxu0 %v208
    %v309 = vpop.f32.mrb[0].mxu0
    %v310 = vadd.f32 %v186, %v309
    %v311 = vpop.f32.mrb[0].mxu0
    %312 = vmatprep.mubr.f32.mxu0 0.0
    %313 = vmatmul.mubr.f32.gmra.mrb[0].mxu0 %v211
    %v314 = vpop.f32.mrb[0].mxu0
    %v315 = vadd.f32 %v186, %v314
    %v316 = vpop.f32.mrb[0].mxu0
    %317 = vdwg.mxu0
    %v318 = vld [vmem:[%s2] sm:$0xff]
    %v319 = vld [vmem:[#allocation2] sm:$0xf]
    %v320 = vld [vmem:[#allocation2 + $0x4] sm:$0xf]
    %v321 = vld [vmem:[#allocation2 + $0x8] sm:$0xf]
    %v322 = vld [vmem:[#allocation2 + $0xc] sm:$0xf]
    %v323 = vld [vmem:[#allocation2 + $0x10] sm:$0xf]
    %v324 = vld [vmem:[#allocation2 + $0x14] sm:$0xf]
    %v325 = vld [vmem:[#allocation2 + $0x18] sm:$0xf]
    %v326 = vld [vmem:[#allocation2 + $0x1c] sm:$0xf]
    %v327 = vld [vmem:[#allocation2 + $0x20] sm:$0xf]
    %v328 = vld [vmem:[#allocation2 + $0x24] sm:$0xf]
    %v329 = vld [vmem:[#allocation2 + $0x28] sm:$0xf]
    %v330 = vld [vmem:[#allocation2 + $0x2c] sm:$0xf]
    %v331 = vld [vmem:[#allocation2 + $0x30] sm:$0xf]
    %v332 = vld [vmem:[#allocation2 + $0x34] sm:$0xf]
    %v333 = vld [vmem:[#allocation2 + $0x38] sm:$0xf]
    %v334 = vld [vmem:[#allocation2 + $0x3c] sm:$0xf]
    %v335 = vld [vmem:[%s3] sm:$0xff]
    %v336 = vld [vmem:[%s4] sm:$0xff]
    %338 = vrot.lane.b32.xlu0 %v335, 32
    %v339 = vpop.permute.xlu0 %338
    %341 = vrot.lane.b32.xlu0 %v335, 64
    %v342 = vpop.permute.xlu0 %341
    %344 = vrot.lane.b32.xlu0 %v335, 96
    %v345 = vpop.permute.xlu0 %344
    %v347 = vsel %vm146, %v335, %v339
    %v348 = vsel %vm188, %v347, %v342
    %vm349 = vcmask 785408
    %v350 = vsel %vm349, %v348, %v345
    %v351 = vmul.f32 %v350, %v318
    %v352 = vpack.c.bf16 %v351, %v351
    %v369 = vunpack.c.l.b16 %v319
    %v370 = vunpack.c.l.b16 %v320
    %v371 = vunpack.c.l.b16 %v321
    %v372 = vunpack.c.l.b16 %v322
    %v373 = vunpack.c.l.b16 %v323
    %v374 = vunpack.c.l.b16 %v324
    %v375 = vunpack.c.l.b16 %v325
    %v376 = vunpack.c.l.b16 %v326
    %v377 = vunpack.c.l.b16 %v327
    %v378 = vunpack.c.l.b16 %v328
    %v379 = vunpack.c.l.b16 %v329
    %v380 = vunpack.c.l.b16 %v330
    %v381 = vunpack.c.l.b16 %v331
    %v382 = vunpack.c.l.b16 %v332
    %v383 = vunpack.c.l.b16 %v333
    %v384 = vunpack.c.l.b16 %v334
    %v385 = vpack.c.b16 %v370, %v369
    %v386 = vpack.c.b16 %v372, %v371
    %v387 = vpack.c.b16 %v374, %v373
    %v388 = vpack.c.b16 %v376, %v375
    %v389 = vpack.c.b16 %v378, %v377
    %v390 = vpack.c.b16 %v380, %v379
    %v391 = vpack.c.b16 %v382, %v381
    %v392 = vpack.c.b16 %v384, %v383
    %401 = vmatprep.subr.bf16.mxu0 0
    %402 = vmatpush1.bf16.msra.mxu0 %v385
    %403 = vmatprep.subr.bf16.mxu0 0
    %404 = vmatpush1.bf16.msra.mxu0 %v386
    %405 = vmatprep.subr.bf16.mxu0 0
    %406 = vmatpush1.bf16.msra.mxu0 %v387
    %407 = vmatprep.subr.bf16.mxu0 0
    %408 = vmatpush1.bf16.msra.mxu0 %v388
    %409 = vmatprep.subr.bf16.mxu0 0
    %410 = vmatpush1.bf16.msra.mxu0 %v389
    %411 = vmatprep.subr.bf16.mxu0 0
    %412 = vmatpush1.bf16.msra.mxu0 %v390
    %413 = vmatprep.subr.bf16.mxu0 0
    %414 = vmatpush1.bf16.msra.mxu0 %v391
    %415 = vmatprep.subr.bf16.mxu0 0
    %416 = vmatpush1.bf16.msra.mxu0 %v392
    %417 = vmatprep.subr.bf16.mxu0 0
    %418 = vmatpush1.bf16.msra.mxu0 0
    %419 = vmatprep.subr.bf16.mxu0 0
    %420 = vmatpush1.bf16.msra.mxu0 0
    %421 = vmatprep.subr.bf16.mxu0 0
    %422 = vmatpush1.bf16.msra.mxu0 0
    %423 = vmatprep.subr.bf16.mxu0 0
    %424 = vmatpush1.bf16.msra.mxu0 0
    %425 = vmatprep.subr.bf16.mxu0 0
    %426 = vmatpush1.bf16.msra.mxu0 0
    %427 = vmatprep.subr.bf16.mxu0 0
    %428 = vmatpush1.bf16.msra.mxu0 0
    %429 = vmatprep.subr.bf16.mxu0 0
    %430 = vmatpush1.bf16.msra.mxu0 0
    %431 = vmatprep.subr.bf16.mxu0 0
    %432 = vmatpush1.bf16.msra.mxu0 0
    %433 = vmatprep.mubr.bf16.mxu0 0
    %434 = vmatmul.mubr.bf16.gmra.mrb[0].mxu0 %v352
    %v435 = vpop.f32.mrb[0].mxu0
    %v436 = vadd.f32 0.0, %v435
    %v437 = vpop.f32.mrb[0].mxu0
    %v438 = vpop.f32.mrb[0].mxu0
    %v439 = vpop.f32.mrb[0].mxu0
    %440 = vdwg.mxu0
    %v441 = vadd.f32 %v280, %v436
    %v442 = vxor.u32 %v441, 2147483648
    %v443 = vmul.f32 %v442, 1.442695
    %v444 = vpow.pop %v443
    %v445 = vadd.f32 %v444, 1.0
    %v446 = vrcp.pop %v445
    %v447 = vmul.f32 1.0, %v446
    %v448 = vtanh.pop %v441
    %450 = vrot.lane.b32.xlu0 %v336, 32
    %v451 = vpop.permute.xlu0 %450
    %v453 = vmul.f32 %v447, %v451
    %455 = vrot.lane.b32.xlu0 %v448, 64
    %v456 = vpop.permute.xlu0 %455
    %v458 = vmul.f32 %v447, %v456
    %460 = vrot.lane.b32.xlu0 %v458, 32
    %v461 = vpop.permute.xlu0 %460
    %v463 = vadd.f32 %v453, %v461
    %v464 = vtanh.pop %v463
    %466 = vrot.lane.b32.xlu0 %v464, 64
    %v467 = vpop.permute.xlu0 %466
    %v469 = vmul.f32 %v447, %v467
    %471 = vrot.lane.b32.xlu0 %v469, 32
    %v472 = vpop.permute.xlu0 %471
    %474 = vrot.lane.b32.xlu0 %v469, 64
    %v475 = vpop.permute.xlu0 %474
    %477 = vrot.lane.b32.xlu0 %v469, 96
    %v478 = vpop.permute.xlu0 %477
    %v480 = vsel %vm146, %v472, %v475
    %v481 = vsel %vm188, %v480, %v478
    %v482 = vsel %vm349, %v481, %v469
    %483 = vst [vmem:[#allocation5] sm:$0xff] %v482
    %v484 = vmul.f32 %v482, %v318
    %v485 = vpack.c.bf16 %v484, %v484
    %486 = vmatprep.subr.bf16.mxu0 0
    %487 = vmatpush1.bf16.msra.mxu0 %v385
    %488 = vmatprep.subr.bf16.mxu0 0
    %489 = vmatpush1.bf16.msra.mxu0 %v386
    %490 = vmatprep.subr.bf16.mxu0 0
    %491 = vmatpush1.bf16.msra.mxu0 %v387
    %492 = vmatprep.subr.bf16.mxu0 0
    %493 = vmatpush1.bf16.msra.mxu0 %v388
    %494 = vmatprep.subr.bf16.mxu0 0
    %495 = vmatpush1.bf16.msra.mxu0 %v389
    %496 = vmatprep.subr.bf16.mxu0 0
    %497 = vmatpush1.bf16.msra.mxu0 %v390
    %498 = vmatprep.subr.bf16.mxu0 0
    %499 = vmatpush1.bf16.msra.mxu0 %v391
    %500 = vmatprep.subr.bf16.mxu0 0
    %501 = vmatpush1.bf16.msra.mxu0 %v392
    %502 = vmatprep.subr.bf16.mxu0 0
    %503 = vmatpush1.bf16.msra.mxu0 0
    %504 = vmatprep.subr.bf16.mxu0 0
    %505 = vmatpush1.bf16.msra.mxu0 0
    %506 = vmatprep.subr.bf16.mxu0 0
    %507 = vmatpush1.bf16.msra.mxu0 0
    %508 = vmatprep.subr.bf16.mxu0 0
    %509 = vmatpush1.bf16.msra.mxu0 0
    %510 = vmatprep.subr.bf16.mxu0 0
    %511 = vmatpush1.bf16.msra.mxu0 0
    %512 = vmatprep.subr.bf16.mxu0 0
    %513 = vmatpush1.bf16.msra.mxu0 0
    %514 = vmatprep.subr.bf16.mxu0 0
    %515 = vmatpush1.bf16.msra.mxu0 0
    %516 = vmatprep.subr.bf16.mxu0 0
    %517 = vmatpush1.bf16.msra.mxu0 0
    %518 = vmatprep.mubr.bf16.mxu0 0
    %519 = vmatmul.mubr.bf16.gmra.mrb[0].mxu0 %v485
    %v520 = vpop.f32.mrb[0].mxu0
    %v521 = vadd.f32 0.0, %v520
    %v522 = vpop.f32.mrb[0].mxu0
    %v523 = vpop.f32.mrb[0].mxu0
    %v524 = vpop.f32.mrb[0].mxu0
    %525 = vdwg.mxu0
    %v526 = vadd.f32 %v285, %v521
    %v527 = vxor.u32 %v526, 2147483648
    %v528 = vmul.f32 %v527, 1.442695
    %v529 = vpow.pop %v528
    %v530 = vadd.f32 %v529, 1.0
    %v531 = vrcp.pop %v530
    %v532 = vmul.f32 1.0, %v531
    %v533 = vtanh.pop %v526
    %v534 = vmul.f32 %v532, %v463
    %536 = vrot.lane.b32.xlu0 %v533, 64
    %v537 = vpop.permute.xlu0 %536
    %v539 = vmul.f32 %v532, %v537
    %541 = vrot.lane.b32.xlu0 %v539, 32
    %v542 = vpop.permute.xlu0 %541
    %v544 = vadd.f32 %v534, %v542
    %v545 = vtanh.pop %v544
    %547 = vrot.lane.b32.xlu0 %v545, 64
    %v548 = vpop.permute.xlu0 %547
    %v550 = vmul.f32 %v532, %v548
    %552 = vrot.lane.b32.xlu0 %v550, 32
    %v553 = vpop.permute.xlu0 %552
    %555 = vrot.lane.b32.xlu0 %v550, 64
    %v556 = vpop.permute.xlu0 %555
    %558 = vrot.lane.b32.xlu0 %v550, 96
    %v559 = vpop.permute.xlu0 %558
    %v561 = vsel %vm146, %v553, %v556
    %v562 = vsel %vm188, %v561, %v559
    %v563 = vsel %vm349, %v562, %v550
    %564 = vst [vmem:[#allocation5 + $0x8] sm:$0xff] %v563
    %v565 = vmul.f32 %v563, %v318
    %v566 = vpack.c.bf16 %v565, %v565
    %567 = vmatprep.subr.bf16.mxu0 0
    %568 = vmatpush1.bf16.msra.mxu0 %v385
    %569 = vmatprep.subr.bf16.mxu0 0
    %570 = vmatpush1.bf16.msra.mxu0 %v386
    %571 = vmatprep.subr.bf16.mxu0 0
    %572 = vmatpush1.bf16.msra.mxu0 %v387
    %573 = vmatprep.subr.bf16.mxu0 0
    %574 = vmatpush1.bf16.msra.mxu0 %v388
    %575 = vmatprep.subr.bf16.mxu0 0
    %576 = vmatpush1.bf16.msra.mxu0 %v389
    %577 = vmatprep.subr.bf16.mxu0 0
    %578 = vmatpush1.bf16.msra.mxu0 %v390
    %579 = vmatprep.subr.bf16.mxu0 0
    %580 = vmatpush1.bf16.msra.mxu0 %v391
    %581 = vmatprep.subr.bf16.mxu0 0
    %582 = vmatpush1.bf16.msra.mxu0 %v392
    %583 = vmatprep.subr.bf16.mxu0 0
    %584 = vmatpush1.bf16.msra.mxu0 0
    %585 = vmatprep.subr.bf16.mxu0 0
    %586 = vmatpush1.bf16.msra.mxu0 0
    %587 = vmatprep.subr.bf16.mxu0 0
    %588 = vmatpush1.bf16.msra.mxu0 0
    %589 = vmatprep.subr.bf16.mxu0 0
    %590 = vmatpush1.bf16.msra.mxu0 0
    %591 = vmatprep.subr.bf16.mxu0 0
    %592 = vmatpush1.bf16.msra.mxu0 0
    %593 = vmatprep.subr.bf16.mxu0 0
    %594 = vmatpush1.bf16.msra.mxu0 0
    %595 = vmatprep.subr.bf16.mxu0 0
    %596 = vmatpush1.bf16.msra.mxu0 0
    %597 = vmatprep.subr.bf16.mxu0 0
    %598 = vmatpush1.bf16.msra.mxu0 0
    %599 = vmatprep.mubr.bf16.mxu0 0
    %600 = vmatmul.mubr.bf16.gmra.mrb[0].mxu0 %v566
    %v601 = vpop.f32.mrb[0].mxu0
    %v602 = vadd.f32 0.0, %v601
    %v603 = vpop.f32.mrb[0].mxu0
    %v604 = vpop.f32.mrb[0].mxu0
    %v605 = vpop.f32.mrb[0].mxu0
    %606 = vdwg.mxu0
    %v607 = vadd.f32 %v290, %v602
    %v608 = vxor.u32 %v607, 2147483648
    %v609 = vmul.f32 %v608, 1.442695
    %v610 = vpow.pop %v609
    %v611 = vadd.f32 %v610, 1.0
    %v612 = vrcp.pop %v611
    %v613 = vmul.f32 1.0, %v612
    %v614 = vtanh.pop %v607
    %v615 = vmul.f32 %v613, %v544
    %617 = vrot.lane.b32.xlu0 %v614, 64
    %v618 = vpop.permute.xlu0 %617
    %v620 = vmul.f32 %v613, %v618
    %622 = vrot.lane.b32.xlu0 %v620, 32
    %v623 = vpop.permute.xlu0 %622
    %v625 = vadd.f32 %v615, %v623
    %v626 = vtanh.pop %v625
    %628 = vrot.lane.b32.xlu0 %v626, 64
    %v629 = vpop.permute.xlu0 %628
    %v631 = vmul.f32 %v613, %v629
    %633 = vrot.lane.b32.xlu0 %v631, 32
    %v634 = vpop.permute.xlu0 %633
    %636 = vrot.lane.b32.xlu0 %v631, 64
    %v637 = vpop.permute.xlu0 %636
    %639 = vrot.lane.b32.xlu0 %v631, 96
    %v640 = vpop.permute.xlu0 %639
    %v642 = vsel %vm146, %v634, %v637
    %v643 = vsel %vm188, %v642, %v640
    %v644 = vsel %vm349, %v643, %v631
    %645 = vst [vmem:[#allocation5 + $0x10] sm:$0xff] %v644
    %v646 = vmul.f32 %v644, %v318
    %v647 = vpack.c.bf16 %v646, %v646
    %648 = vmatprep.subr.bf16.mxu0 0
    %649 = vmatpush1.bf16.msra.mxu0 %v385
    %650 = vmatprep.subr.bf16.mxu0 0
    %651 = vmatpush1.bf16.msra.mxu0 %v386
    %652 = vmatprep.subr.bf16.mxu0 0
    %653 = vmatpush1.bf16.msra.mxu0 %v387
    %654 = vmatprep.subr.bf16.mxu0 0
    %655 = vmatpush1.bf16.msra.mxu0 %v388
    %656 = vmatprep.subr.bf16.mxu0 0
    %657 = vmatpush1.bf16.msra.mxu0 %v389
    %658 = vmatprep.subr.bf16.mxu0 0
    %659 = vmatpush1.bf16.msra.mxu0 %v390
    %660 = vmatprep.subr.bf16.mxu0 0
    %661 = vmatpush1.bf16.msra.mxu0 %v391
    %662 = vmatprep.subr.bf16.mxu0 0
    %663 = vmatpush1.bf16.msra.mxu0 %v392
    %664 = vmatprep.subr.bf16.mxu0 0
    %665 = vmatpush1.bf16.msra.mxu0 0
    %666 = vmatprep.subr.bf16.mxu0 0
    %667 = vmatpush1.bf16.msra.mxu0 0
    %668 = vmatprep.subr.bf16.mxu0 0
    %669 = vmatpush1.bf16.msra.mxu0 0
    %670 = vmatprep.subr.bf16.mxu0 0
    %671 = vmatpush1.bf16.msra.mxu0 0
    %672 = vmatprep.subr.bf16.mxu0 0
    %673 = vmatpush1.bf16.msra.mxu0 0
    %674 = vmatprep.subr.bf16.mxu0 0
    %675 = vmatpush1.bf16.msra.mxu0 0
    %676 = vmatprep.subr.bf16.mxu0 0
    %677 = vmatpush1.bf16.msra.mxu0 0
    %678 = vmatprep.subr.bf16.mxu0 0
    %679 = vmatpush1.bf16.msra.mxu0 0
    %680 = vmatprep.mubr.bf16.mxu0 0
    %681 = vmatmul.mubr.bf16.gmra.mrb[0].mxu0 %v647
    %v682 = vpop.f32.mrb[0].mxu0
    %v683 = vadd.f32 0.0, %v682
    %v684 = vpop.f32.mrb[0].mxu0
    %v685 = vpop.f32.mrb[0].mxu0
    %v686 = vpop.f32.mrb[0].mxu0
    %687 = vdwg.mxu0
    %v688 = vadd.f32 %v295, %v683
    %v689 = vxor.u32 %v688, 2147483648
    %v690 = vmul.f32 %v689, 1.442695
    %v691 = vpow.pop %v690
    %v692 = vadd.f32 %v691, 1.0
    %v693 = vrcp.pop %v692
    %v694 = vmul.f32 1.0, %v693
    %v695 = vtanh.pop %v688
    %v696 = vmul.f32 %v694, %v625
    %698 = vrot.lane.b32.xlu0 %v695, 64
    %v699 = vpop.permute.xlu0 %698
    %v701 = vmul.f32 %v694, %v699
    %703 = vrot.lane.b32.xlu0 %v701, 32
    %v704 = vpop.permute.xlu0 %703
    %v706 = vadd.f32 %v696, %v704
    %v707 = vtanh.pop %v706
    %709 = vrot.lane.b32.xlu0 %v707, 64
    %v710 = vpop.permute.xlu0 %709
    %v712 = vmul.f32 %v694, %v710
    %714 = vrot.lane.b32.xlu0 %v712, 32
    %v715 = vpop.permute.xlu0 %714
    %717 = vrot.lane.b32.xlu0 %v712, 64
    %v718 = vpop.permute.xlu0 %717
    %720 = vrot.lane.b32.xlu0 %v712, 96
    %v721 = vpop.permute.xlu0 %720
    %v723 = vsel %vm146, %v715, %v718
    %v724 = vsel %vm188, %v723, %v721
    %v725 = vsel %vm349, %v724, %v712
    %726 = vst [vmem:[#allocation5 + $0x18] sm:$0xff] %v725
    %v727 = vmul.f32 %v725, %v318
    %v728 = vpack.c.bf16 %v727, %v727
    %729 = vmatprep.subr.bf16.mxu0 0
    %730 = vmatpush1.bf16.msra.mxu0 %v385
    %731 = vmatprep.subr.bf16.mxu0 0
    %732 = vmatpush1.bf16.msra.mxu0 %v386
    %733 = vmatprep.subr.bf16.mxu0 0
    %734 = vmatpush1.bf16.msra.mxu0 %v387
    %735 = vmatprep.subr.bf16.mxu0 0
    %736 = vmatpush1.bf16.msra.mxu0 %v388
    %737 = vmatprep.subr.bf16.mxu0 0
    %738 = vmatpush1.bf16.msra.mxu0 %v389
    %739 = vmatprep.subr.bf16.mxu0 0
    %740 = vmatpush1.bf16.msra.mxu0 %v390
    %741 = vmatprep.subr.bf16.mxu0 0
    %742 = vmatpush1.bf16.msra.mxu0 %v391
    %743 = vmatprep.subr.bf16.mxu0 0
    %744 = vmatpush1.bf16.msra.mxu0 %v392
    %745 = vmatprep.subr.bf16.mxu0 0
    %746 = vmatpush1.bf16.msra.mxu0 0
    %747 = vmatprep.subr.bf16.mxu0 0
    %748 = vmatpush1.bf16.msra.mxu0 0
    %749 = vmatprep.subr.bf16.mxu0 0
    %750 = vmatpush1.bf16.msra.mxu0 0
    %751 = vmatprep.subr.bf16.mxu0 0
    %752 = vmatpush1.bf16.msra.mxu0 0
    %753 = vmatprep.subr.bf16.mxu0 0
    %754 = vmatpush1.bf16.msra.mxu0 0
    %755 = vmatprep.subr.bf16.mxu0 0
    %756 = vmatpush1.bf16.msra.mxu0 0
    %757 = vmatprep.subr.bf16.mxu0 0
    %758 = vmatpush1.bf16.msra.mxu0 0
    %759 = vmatprep.subr.bf16.mxu0 0
    %760 = vmatpush1.bf16.msra.mxu0 0
    %761 = vmatprep.mubr.bf16.mxu0 0
    %762 = vmatmul.mubr.bf16.gmra.mrb[0].mxu0 %v728
    %v763 = vpop.f32.mrb[0].mxu0
    %v764 = vadd.f32 0.0, %v763
    %v765 = vpop.f32.mrb[0].mxu0
    %v766 = vpop.f32.mrb[0].mxu0
    %v767 = vpop.f32.mrb[0].mxu0
    %768 = vdwg.mxu0
    %v769 = vadd.f32 %v300, %v764
    %v770 = vxor.u32 %v769, 2147483648
    %v771 = vmul.f32 %v770, 1.442695
    %v772 = vpow.pop %v771
    %v773 = vadd.f32 %v772, 1.0
    %v774 = vrcp.pop %v773
    %v775 = vmul.f32 1.0, %v774
    %v776 = vtanh.pop %v769
    %v777 = vmul.f32 %v775, %v706
    %779 = vrot.lane.b32.xlu0 %v776, 64
    %v780 = vpop.permute.xlu0 %779
    %v782 = vmul.f32 %v775, %v780
    %784 = vrot.lane.b32.xlu0 %v782, 32
    %v785 = vpop.permute.xlu0 %784
    %v787 = vadd.f32 %v777, %v785
    %v788 = vtanh.pop %v787
    %790 = vrot.lane.b32.xlu0 %v788, 64
    %v791 = vpop.permute.xlu0 %790
    %v793 = vmul.f32 %v775, %v791
    %795 = vrot.lane.b32.xlu0 %v793, 32
    %v796 = vpop.permute.xlu0 %795
    %798 = vrot.lane.b32.xlu0 %v793, 64
    %v799 = vpop.permute.xlu0 %798
    %801 = vrot.lane.b32.xlu0 %v793, 96
    %v802 = vpop.permute.xlu0 %801
    %v804 = vsel %vm146, %v796, %v799
    %v805 = vsel %vm188, %v804, %v802
    %v806 = vsel %vm349, %v805, %v793
    %807 = vst [vmem:[#allocation5 + $0x20] sm:$0xff] %v806
    %v808 = vmul.f32 %v806, %v318
    %v809 = vpack.c.bf16 %v808, %v808
    %810 = vmatprep.subr.bf16.mxu0 0
    %811 = vmatpush1.bf16.msra.mxu0 %v385
    %812 = vmatprep.subr.bf16.mxu0 0
    %813 = vmatpush1.bf16.msra.mxu0 %v386
    %814 = vmatprep.subr.bf16.mxu0 0
    %815 = vmatpush1.bf16.msra.mxu0 %v387
    %816 = vmatprep.subr.bf16.mxu0 0
    %817 = vmatpush1.bf16.msra.mxu0 %v388
    %818 = vmatprep.subr.bf16.mxu0 0
    %819 = vmatpush1.bf16.msra.mxu0 %v389
    %820 = vmatprep.subr.bf16.mxu0 0
    %821 = vmatpush1.bf16.msra.mxu0 %v390
    %822 = vmatprep.subr.bf16.mxu0 0
    %823 = vmatpush1.bf16.msra.mxu0 %v391
    %824 = vmatprep.subr.bf16.mxu0 0
    %825 = vmatpush1.bf16.msra.mxu0 %v392
    %826 = vmatprep.subr.bf16.mxu0 0
    %827 = vmatpush1.bf16.msra.mxu0 0
    %828 = vmatprep.subr.bf16.mxu0 0
    %829 = vmatpush1.bf16.msra.mxu0 0
    %830 = vmatprep.subr.bf16.mxu0 0
    %831 = vmatpush1.bf16.msra.mxu0 0
    %832 = vmatprep.subr.bf16.mxu0 0
    %833 = vmatpush1.bf16.msra.mxu0 0
    %834 = vmatprep.subr.bf16.mxu0 0
    %835 = vmatpush1.bf16.msra.mxu0 0
    %836 = vmatprep.subr.bf16.mxu0 0
    %837 = vmatpush1.bf16.msra.mxu0 0
    %838 = vmatprep.subr.bf16.mxu0 0
    %839 = vmatpush1.bf16.msra.mxu0 0
    %840 = vmatprep.subr.bf16.mxu0 0
    %841 = vmatpush1.bf16.msra.mxu0 0
    %842 = vmatprep.mubr.bf16.mxu0 0
    %843 = vmatmul.mubr.bf16.gmra.mrb[0].mxu0 %v809
    %v844 = vpop.f32.mrb[0].mxu0
    %v845 = vadd.f32 0.0, %v844
    %v846 = vpop.f32.mrb[0].mxu0
    %v847 = vpop.f32.mrb[0].mxu0
    %v848 = vpop.f32.mrb[0].mxu0
    %849 = vdwg.mxu0
    %v850 = vadd.f32 %v305, %v845
    %v851 = vxor.u32 %v850, 2147483648
    %v852 = vmul.f32 %v851, 1.442695
    %v853 = vpow.pop %v852
    %v854 = vadd.f32 %v853, 1.0
    %v855 = vrcp.pop %v854
    %v856 = vmul.f32 1.0, %v855
    %v857 = vtanh.pop %v850
    %v858 = vmul.f32 %v856, %v787
    %860 = vrot.lane.b32.xlu0 %v857, 64
    %v861 = vpop.permute.xlu0 %860
    %v863 = vmul.f32 %v856, %v861
    %865 = vrot.lane.b32.xlu0 %v863, 32
    %v866 = vpop.permute.xlu0 %865
    %v868 = vadd.f32 %v858, %v866
    %v869 = vtanh.pop %v868
    %871 = vrot.lane.b32.xlu0 %v869, 64
    %v872 = vpop.permute.xlu0 %871
    %v874 = vmul.f32 %v856, %v872
    %876 = vrot.lane.b32.xlu0 %v874, 32
    %v877 = vpop.permute.xlu0 %876
    %879 = vrot.lane.b32.xlu0 %v874, 64
    %v880 = vpop.permute.xlu0 %879
    %882 = vrot.lane.b32.xlu0 %v874, 96
    %v883 = vpop.permute.xlu0 %882
    %v885 = vsel %vm146, %v877, %v880
    %v886 = vsel %vm188, %v885, %v883
    %v887 = vsel %vm349, %v886, %v874
    %888 = vst [vmem:[#allocation5 + $0x28] sm:$0xff] %v887
    %v889 = vmul.f32 %v887, %v318
    %v890 = vpack.c.bf16 %v889, %v889
    %891 = vmatprep.subr.bf16.mxu0 0
    %892 = vmatpush1.bf16.msra.mxu0 %v385
    %893 = vmatprep.subr.bf16.mxu0 0
    %894 = vmatpush1.bf16.msra.mxu0 %v386
    %895 = vmatprep.subr.bf16.mxu0 0
    %896 = vmatpush1.bf16.msra.mxu0 %v387
    %897 = vmatprep.subr.bf16.mxu0 0
    %898 = vmatpush1.bf16.msra.mxu0 %v388
    %899 = vmatprep.subr.bf16.mxu0 0
    %900 = vmatpush1.bf16.msra.mxu0 %v389
    %901 = vmatprep.subr.bf16.mxu0 0
    %902 = vmatpush1.bf16.msra.mxu0 %v390
    %903 = vmatprep.subr.bf16.mxu0 0
    %904 = vmatpush1.bf16.msra.mxu0 %v391
    %905 = vmatprep.subr.bf16.mxu0 0
    %906 = vmatpush1.bf16.msra.mxu0 %v392
    %907 = vmatprep.subr.bf16.mxu0 0
    %908 = vmatpush1.bf16.msra.mxu0 0
    %909 = vmatprep.subr.bf16.mxu0 0
    %910 = vmatpush1.bf16.msra.mxu0 0
    %911 = vmatprep.subr.bf16.mxu0 0
    %912 = vmatpush1.bf16.msra.mxu0 0
    %913 = vmatprep.subr.bf16.mxu0 0
    %914 = vmatpush1.bf16.msra.mxu0 0
    %915 = vmatprep.subr.bf16.mxu0 0
    %916 = vmatpush1.bf16.msra.mxu0 0
    %917 = vmatprep.subr.bf16.mxu0 0
    %918 = vmatpush1.bf16.msra.mxu0 0
    %919 = vmatprep.subr.bf16.mxu0 0
    %920 = vmatpush1.bf16.msra.mxu0 0
    %921 = vmatprep.subr.bf16.mxu0 0
    %922 = vmatpush1.bf16.msra.mxu0 0
    %923 = vmatprep.mubr.bf16.mxu0 0
    %924 = vmatmul.mubr.bf16.gmra.mrb[0].mxu0 %v890
    %v925 = vpop.f32.mrb[0].mxu0
    %v926 = vadd.f32 0.0, %v925
    %v927 = vpop.f32.mrb[0].mxu0
    %v928 = vpop.f32.mrb[0].mxu0
    %v929 = vpop.f32.mrb[0].mxu0
    %930 = vdwg.mxu0
    %v931 = vadd.f32 %v310, %v926
    %v932 = vxor.u32 %v931, 2147483648
    %v933 = vmul.f32 %v932, 1.442695
    %v934 = vpow.pop %v933
    %v935 = vadd.f32 %v934, 1.0
    %v936 = vrcp.pop %v935
    %v937 = vmul.f32 1.0, %v936
    %v938 = vtanh.pop %v931
    %v939 = vmul.f32 %v937, %v868
    %941 = vrot.lane.b32.xlu0 %v938, 64
    %v942 = vpop.permute.xlu0 %941
    %v944 = vmul.f32 %v937, %v942
    %946 = vrot.lane.b32.xlu0 %v944, 32
    %v947 = vpop.permute.xlu0 %946
    %v949 = vadd.f32 %v939, %v947
    %v950 = vtanh.pop %v949
    %952 = vrot.lane.b32.xlu0 %v950, 64
    %v953 = vpop.permute.xlu0 %952
    %v955 = vmul.f32 %v937, %v953
    %957 = vrot.lane.b32.xlu0 %v955, 32
    %v958 = vpop.permute.xlu0 %957
    %960 = vrot.lane.b32.xlu0 %v955, 64
    %v961 = vpop.permute.xlu0 %960
    %963 = vrot.lane.b32.xlu0 %v955, 96
    %v964 = vpop.permute.xlu0 %963
    %v966 = vsel %vm146, %v958, %v961
    %v967 = vsel %vm188, %v966, %v964
    %v968 = vsel %vm349, %v967, %v955
    %969 = vst [vmem:[#allocation5 + $0x30] sm:$0xff] %v968
    %v970 = vmul.f32 %v968, %v318
    %v971 = vpack.c.bf16 %v970, %v970
    %972 = vmatprep.subr.bf16.mxu0 0
    %973 = vmatpush1.bf16.msra.mxu0 %v385
    %974 = vmatprep.subr.bf16.mxu0 0
    %975 = vmatpush1.bf16.msra.mxu0 %v386
    %976 = vmatprep.subr.bf16.mxu0 0
    %977 = vmatpush1.bf16.msra.mxu0 %v387
    %978 = vmatprep.subr.bf16.mxu0 0
    %979 = vmatpush1.bf16.msra.mxu0 %v388
    %980 = vmatprep.subr.bf16.mxu0 0
    %981 = vmatpush1.bf16.msra.mxu0 %v389
    %982 = vmatprep.subr.bf16.mxu0 0
    %983 = vmatpush1.bf16.msra.mxu0 %v390
    %984 = vmatprep.subr.bf16.mxu0 0
    %985 = vmatpush1.bf16.msra.mxu0 %v391
    %986 = vmatprep.subr.bf16.mxu0 0
    %987 = vmatpush1.bf16.msra.mxu0 %v392
    %988 = vmatprep.subr.bf16.mxu0 0
    %989 = vmatpush1.bf16.msra.mxu0 0
    %990 = vmatprep.subr.bf16.mxu0 0
    %991 = vmatpush1.bf16.msra.mxu0 0
    %992 = vmatprep.subr.bf16.mxu0 0
    %993 = vmatpush1.bf16.msra.mxu0 0
    %994 = vmatprep.subr.bf16.mxu0 0
    %995 = vmatpush1.bf16.msra.mxu0 0
    %996 = vmatprep.subr.bf16.mxu0 0
    %997 = vmatpush1.bf16.msra.mxu0 0
    %998 = vmatprep.subr.bf16.mxu0 0
    %999 = vmatpush1.bf16.msra.mxu0 0
    %1000 = vmatprep.subr.bf16.mxu0 0
    %1001 = vmatpush1.bf16.msra.mxu0 0
    %1002 = vmatprep.subr.bf16.mxu0 0
    %1003 = vmatpush1.bf16.msra.mxu0 0
    %1004 = vmatprep.mubr.bf16.mxu0 0
    %1005 = vmatmul.mubr.bf16.gmra.mrb[0].mxu0 %v971
    %v1006 = vpop.f32.mrb[0].mxu0
    %v1007 = vadd.f32 0.0, %v1006
    %v1008 = vpop.f32.mrb[0].mxu0
    %v1009 = vpop.f32.mrb[0].mxu0
    %v1010 = vpop.f32.mrb[0].mxu0
    %1011 = vdwg.mxu0
    %v1012 = vadd.f32 %v315, %v1007
    %v1013 = vxor.u32 %v1012, 2147483648
    %v1014 = vmul.f32 %v1013, 1.442695
    %v1015 = vpow.pop %v1014
    %v1016 = vadd.f32 %v1015, 1.0
    %v1017 = vrcp.pop %v1016
    %v1018 = vmul.f32 1.0, %v1017
    %v1019 = vtanh.pop %v1012
    %v1020 = vmul.f32 %v1018, %v949
    %1022 = vrot.lane.b32.xlu0 %v1019, 64
    %v1023 = vpop.permute.xlu0 %1022
    %v1025 = vmul.f32 %v1018, %v1023
    %1027 = vrot.lane.b32.xlu0 %v1025, 32
    %v1028 = vpop.permute.xlu0 %1027
    %v1030 = vadd.f32 %v1020, %v1028
    %v1031 = vtanh.pop %v1030
    %1033 = vrot.lane.b32.xlu0 %v1031, 64
    %v1034 = vpop.permute.xlu0 %1033
    %v1036 = vmul.f32 %v1018, %v1034
    %1038 = vrot.lane.b32.xlu0 %v1036, 32
    %v1039 = vpop.permute.xlu0 %1038
    %1041 = vrot.lane.b32.xlu0 %v1036, 64
    %v1042 = vpop.permute.xlu0 %1041
    %1044 = vrot.lane.b32.xlu0 %v1036, 96
    %v1045 = vpop.permute.xlu0 %1044
    %v1047 = vsel %vm146, %v1039, %v1042
    %v1048 = vsel %vm188, %v1047, %v1045
    %v1049 = vsel %vm349, %v1048, %v1036
    %1050 = vst [vmem:[#allocation5 + $0x38] sm:$0xff] %v1049
    %1051 = vst.msk [vmem:[#allocation6] sm:$0xff] %vm146, %v1039
    %1053 = vrot.lane.b32.xlu0 %v1030, 96
    %v1054 = vpop.permute.xlu0 %1053
    %1056 = vst.msk [vmem:[#allocation8] sm:$0xff] %vm146, %v1054
    // Predicated region
    $region38: #{tpu_custom_call.1} parent=1 // pred_check
      _
    $region39: #{tpu_custom_call.1} parent=1 // pred_check_branch
      %1058 = sbr.rel (0) target = $region41
    $region40: #{tpu_custom_call.1} parent=1 // pred_region
      %s1060 = ssub.s32 1024, 1024
      %1061 = vsyncadd [#allocation4], %s1060
      %s1062 = sshll.u32 [#allocation5], 4
      %s1063 = int_to_ptr.vmem [resolvable:$true] %s1062
      %1068 = dma.vmem_to_hbm [thread:$0]  %s1063, 1024, %s8, [#allocation4], 128, 128, 8
    $region41: #{tpu_custom_call.1} parent=1 // pred_fallthru
      _
    // Predicated region
    $region42: #{tpu_custom_call.1} parent=1 // pred_check
      _
    $region43: #{tpu_custom_call.1} parent=1 // pred_check_branch
      %1070 = sbr.rel (0) target = $region45
    $region44: #{tpu_custom_call.1} parent=1 // pred_region
      %s1072 = ssub.s32 128, 128
      %1073 = vsyncadd [#allocation7], %s1072
      %s1075 = sshll.u32 [#allocation6], 4
      %s1076 = int_to_ptr.vmem [resolvable:$true] %s1075
      %1078 = dma.vmem_to_hbm [thread:$0]  %s1076, 128, %s9, [#allocation7]
    $region45: #{tpu_custom_call.1} parent=1 // pred_fallthru
      _
    // Predicated region
    $region46: #{tpu_custom_call.1} parent=1 // pred_check
      _
    $region47: #{tpu_custom_call.1} parent=1 // pred_check_branch
      %1080 = sbr.rel (0) target = $region49
    $region48: #{tpu_custom_call.1} parent=1 // pred_region
      %s1082 = ssub.s32 128, 128
      %1083 = vsyncadd [#allocation7], %s1082
      %s1085 = sshll.u32 [#allocation8], 4
      %s1086 = int_to_ptr.vmem [resolvable:$true] %s1085
      %1088 = dma.vmem_to_hbm [thread:$0]  %s1086, 128, %s10, [#allocation7]
    $region49: #{tpu_custom_call.1} parent=1 // pred_fallthru
      _
    // Predicated region
    $region50: #{tpu_custom_call.1} parent=1 // pred_check
      _
    $region51: #{tpu_custom_call.1} parent=1 // pred_check_branch
      %1090 = sbr.rel (0) target = $region53
    $region52: #{tpu_custom_call.1} parent=1 // pred_region
      %1091 = dma.done [#allocation4], 1024
    $region53: #{tpu_custom_call.1} parent=1 // pred_fallthru
      _
    // Predicated region
    $region54: #{tpu_custom_call.1} parent=1 // pred_check
      _
    $region55: #{tpu_custom_call.1} parent=1 // pred_check_branch
      %1093 = sbr.rel (0) target = $region57
    $region56: #{tpu_custom_call.1} parent=1 // pred_region
      %1094 = dma.done [#allocation7], 128
    $region57: #{tpu_custom_call.1} parent=1 // pred_fallthru
      _
    // Predicated region
    $region58: #{tpu_custom_call.1} parent=1 // pred_check
      _
    $region59: #{tpu_custom_call.1} parent=1 // pred_check_branch
      %1096 = sbr.rel (0) target = $region61
    $region60: #{tpu_custom_call.1} parent=1 // pred_region
      %1097 = dma.done [#allocation7], 128
    $region61: #{tpu_custom_call.1} parent=1 // pred_fallthru
      _
    %1098 = vsyncpa [#allocation3], 1
    %1099 = vsyncpa [#allocation4], 1
    %1100 = vsyncpa [#allocation7], 1

</llo_original>
